<compile_context>
chip_gen: v5e
topology: v5e:2x2
jax: 0.10.0
libtpu: 0.0.40
codegen_flags: <defaults>
</compile_context>

<pallas_src>
import functools

import jax
import jax.numpy as jnp
import numpy as np
from jax import lax
from jax.experimental import pallas as pl
from jax.experimental.pallas import tpu as pltpu


def bilstm_kernel(cidx_ref, tidx_ref, echar_ref, eword_ref, wlow_ref, wup_ref,
                  lin_ref, out_ref,
                  xc_s, xw_s, xpl_s, low_s, hf_s, hb_s, xin_s,
                  *, T, Dc, Dw, Hc, Hw):
    f32 = jnp.float32
    bf16 = jnp.bfloat16
    G = 4 * Hw

    # ---------------- fused embedding gathers (dynamic leading-dim index) ----
    # tables are (N, 1, D); indices come from SMEM; rows land in VMEM scratch.
    for t in range(T):
        xc_s[t:t + 1, :] = echar_ref[cidx_ref[t]]          # (1, Dc)
        xw_s[t:t + 1, :] = eword_ref[tidx_ref[t]]          # (1, Dw)

    # ---------------- lower (char) LSTM --------------------------------------
    # input-side gate projections for ALL timesteps in one matmul, bias folded;
    # staged in scratch so the serial loop only does row loads.
    xpl_s[...] = (jnp.dot(xc_s[...].astype(bf16), wlow_ref[0:Dc, :],
                          preferred_element_type=f32)
                  + wlow_ref[Dc + Hc:Dc + Hc + 1, :].astype(f32))     # (T, 4Hc)

    whh_l = wlow_ref[Dc:Dc + Hc, :]                        # (Hc, 4Hc) bf16, ~1 vreg
    h = jnp.zeros((1, Hc), f32)
    c = jnp.zeros((1, Hc), f32)
    for t in range(T):
        gates = xpl_s[t:t + 1, :] + jnp.dot(h.astype(bf16), whh_l,
                                            preferred_element_type=f32)
        ifo = jax.nn.sigmoid(gates)                        # one wide EUP push
        g = jnp.tanh(gates[:, 2 * Hc:3 * Hc])
        c = ifo[:, Hc:2 * Hc] * c + ifo[:, 0:Hc] * g
        h = ifo[:, 3 * Hc:4 * Hc] * jnp.tanh(c)
        low_s[t:t + 1, :] = h

    # ---------------- upper BiLSTM: fused fwd + bwd ---------------------------
    # batched input projection for BOTH directions (fwd cols 0:G, bwd cols G:2G)
    xproj_up = (jnp.dot(low_s[...].astype(bf16), wup_ref[0:Hc, :],
                        preferred_element_type=f32)
                + jnp.dot(xw_s[...].astype(bf16), wup_ref[Hc:Hc + Dw, :],
                          preferred_element_type=f32)
                + wup_ref[Hc + Dw + Hw:Hc + Dw + Hw + 1, :].astype(f32))  # (T, 8Hw)

    # interleave fwd/bwd per-step rows ONCE, off the recurrence chain:
    # xin_s[2t] = fwd proj at time t, xin_s[2t+1] = bwd proj at time T-1-t.
    for t in range(T):
        xin_s[2 * t:2 * t + 1, :] = xproj_up[t:t + 1, 0:G]
        xin_s[2 * t + 1:2 * t + 2, :] = xproj_up[T - 1 - t:T - t, G:2 * G]

    whh_stack = wup_ref[Hc + Dw:Hc + Dw + Hw, :]           # (Hw, 8Hw) bf16, ~4 vregs
    row_is_fwd = lax.broadcasted_iota(jnp.int32, (2, G), 0) == 0

    h2 = jnp.zeros((2, Hw), f32)                           # row0 = fwd, row1 = bwd
    c2 = jnp.zeros((2, Hw), f32)
    for t in range(T):
        hmat = jnp.dot(h2.astype(bf16), whh_stack,
                       preferred_element_type=f32)         # (2, 8Hw)
        # row 0 wants cols 0:G (fwd Whh), row 1 wants cols G:2G (bwd Whh);
        # both slices are 128-lane aligned -> plain VPU select, no relayout.
        rec = jnp.where(row_is_fwd, hmat[:, 0:G], hmat[:, G:2 * G])   # (2, 4Hw)
        gates = rec + xin_s[2 * t:2 * t + 2, :]            # contiguous 2-row load
        ifo = jax.nn.sigmoid(gates)
        g = jnp.tanh(gates[:, 2 * Hw:3 * Hw])
        c2 = ifo[:, Hw:2 * Hw] * c2 + ifo[:, 0:Hw] * g
        h2 = ifo[:, 3 * Hw:4 * Hw] * jnp.tanh(c2)
        hf_s[t:t + 1, :] = h2[0:1, :]
        hb_s[T - 1 - t:T - t, :] = h2[1:2, :]

    # ---------------- tag projection + log_softmax (lane-dense padded) -------
    # lin_ref is only touched now, after both recurrences (vreg pressure).
    logits = (jnp.dot(hf_s[...].astype(bf16), lin_ref[0:Hw, :],
                      preferred_element_type=f32)
              + jnp.dot(hb_s[...].astype(bf16), lin_ref[Hw:2 * Hw, :],
                        preferred_element_type=f32)
              + lin_ref[2 * Hw:2 * Hw + 1, :].astype(f32))            # (T, n_pad)
    m = jnp.max(logits, axis=1, keepdims=True)
    z = logits - m
    lse = jnp.log(jnp.sum(jnp.exp(z), axis=1, keepdims=True))
    out_ref[...] = z - lse


def pack_params(params):
    """One-time packing of module parameters into MXU-friendly bf16 slabs.

    Hoisted off the per-call path (perf review): the forward pass then only
    does the chars[-1] slice and the pallas_call.
    """
    f32, bf16 = jnp.float32, jnp.bfloat16
    Hw = params["w_hh_uf"].shape[1]
    n_tags = params["W_tag"].shape[0]
    n_pad = ((n_tags + 127) // 128) * 128                  # lane-dense output width

    # lower (char) LSTM slab: [W_ih^T ; W_hh^T ; b_ih+b_hh]   -> (Dc+Hc+1, 4Hc)
    wlow = jnp.concatenate(
        [params["w_ih_l"].T, params["w_hh_l"].T,
         (params["b_ih_l"] + params["b_hh_l"])[None, :]], axis=0).astype(bf16)

    # upper BiLSTM slab (fwd cols 0:4Hw, bwd cols 4Hw:8Hw):
    #   [W_in_low^T ; W_in_word^T ; W_hh^T ; b]               -> (Hc+Dw+Hw+1, 8Hw)
    w_in = jnp.concatenate([params["w_ih_uf"].T, params["w_ih_ub"].T], axis=1)
    whh = jnp.concatenate([params["w_hh_uf"].T, params["w_hh_ub"].T], axis=1)
    b_up = jnp.concatenate([params["b_ih_uf"] + params["b_hh_uf"],
                            params["b_ih_ub"] + params["b_hh_ub"]])[None, :]
    wup = jnp.concatenate([w_in, whh, b_up], axis=0).astype(bf16)

    # tag projection slab, padded to 128 lanes; pad bias = -1e9 so the in-kernel
    # log_softmax over the padded row is exact on the real columns.
    wl = jnp.zeros((2 * Hw, n_pad), f32).at[:, :n_tags].set(params["W_tag"].T.astype(f32))
    bl = jnp.full((1, n_pad), -1e9, f32).at[0, :n_tags].set(params["b_tag"].astype(f32))
    lin = jnp.concatenate([wl, bl], axis=0).astype(bf16)

    # embedding tables reshaped (N, 1, D) so the in-kernel gather is a dynamic
    # *leading*-dim index; kept f32, rows cast to bf16 at the matmuls.
    echar = params["E_char"].astype(f32)[:, None, :]
    eword = params["E_word"].astype(f32)[:, None, :]

    packed = {"echar": echar, "eword": eword, "wlow": wlow, "wup": wup, "lin": lin}
    return packed, n_tags


@functools.partial(jax.jit, static_argnames=("n_tags",))
def customed_bilstm_forward(packed, tokens, chars, *, n_tags):
    f32 = jnp.float32
    echar, eword = packed["echar"], packed["eword"]
    wlow, wup, lin = packed["wlow"], packed["wup"], packed["lin"]
    Dc = echar.shape[2]
    Dw = eword.shape[2]
    Hc = wlow.shape[1] // 4
    Hw = wup.shape[1] // 8
    n_pad = lin.shape[1]
    T = int(tokens.shape[0])

    # only char_tensor[-1] reaches the output, exactly like lower_lstm_out[-1]
    # in the PyTorch forward (batch_first LSTM, last batch row).
    cidx = chars[-1].astype(jnp.int32)                     # (T,)
    tidx = tokens.astype(jnp.int32)                        # (T,)

    kernel = functools.partial(bilstm_kernel, T=T, Dc=Dc, Dw=Dw, Hc=Hc, Hw=Hw)
    smem = pl.BlockSpec(memory_space=pltpu.MemorySpace.SMEM)
    vmem = pl.BlockSpec(memory_space=pltpu.MemorySpace.VMEM)
    out = pl.pallas_call(
        kernel,
        out_shape=jax.ShapeDtypeStruct((T, n_pad), f32),
        in_specs=[smem, smem, vmem, vmem, vmem, vmem, vmem],
        out_specs=vmem,
        scratch_shapes=[
            pltpu.VMEM((T, Dc), f32),            # gathered char-embedding rows
            pltpu.VMEM((T, Dw), f32),            # gathered word-embedding rows
            pltpu.VMEM((T, 4 * Hc), f32),        # lower input-side gate projections
            pltpu.VMEM((T, Hc), f32),            # lower LSTM hidden states
            pltpu.VMEM((T, Hw), f32),            # upper fwd hidden states
            pltpu.VMEM((T, Hw), f32),            # upper bwd hidden states
            pltpu.VMEM((2 * T, 4 * Hw), f32),    # interleaved upper input projections
        ],
    )(cidx, tidx, echar, eword, wlow, wup, lin)
    return out[:, :n_tags]


# ---------------- pure-JAX reference (mirrors the PyTorch forward, f32) ----------
def _ref_lstm(xs, w_ih, w_hh, b_ih, b_hh, H):
    h = jnp.zeros((H,), jnp.float32)
    c = jnp.zeros((H,), jnp.float32)
    outs = []
    for t in range(xs.shape[0]):
        g = w_ih @ xs[t] + b_ih + w_hh @ h + b_hh
        i = jax.nn.sigmoid(g[0:H])
        f = jax.nn.sigmoid(g[H:2 * H])
        gg = jnp.tanh(g[2 * H:3 * H])
        o = jax.nn.sigmoid(g[3 * H:4 * H])
        c = f * c + i * gg
        h = o * jnp.tanh(c)
        outs.append(h)
    return jnp.stack(outs)


def ref_forward(params, tokens, chars):
    Hc = params["w_hh_l"].shape[1]
    Hw = params["w_hh_uf"].shape[1]
    xc_last = params["E_char"][chars[-1]]
    low = _ref_lstm(xc_last, params["w_ih_l"], params["w_hh_l"],
                    params["b_ih_l"], params["b_hh_l"], Hc)
    xw = params["E_word"][tokens]
    feat = jnp.concatenate([low, xw], axis=1)
    f_out = _ref_lstm(feat, params["w_ih_uf"], params["w_hh_uf"],
                      params["b_ih_uf"], params["b_hh_uf"], Hw)
    b_out = _ref_lstm(feat[::-1], params["w_ih_ub"], params["w_hh_ub"],
                      params["b_ih_ub"], params["b_hh_ub"], Hw)[::-1]
    h = jnp.concatenate([f_out, b_out], axis=1)
    logits = h @ params["W_tag"].T + params["b_tag"]
    return jax.nn.log_softmax(logits, axis=1)


if __name__ == "__main__":
    alphabet_size, vocab_size = 20, 30
    Dc, Hc = 8, 16          # char_embed_dim, char_hidden_dim
    Dw, Hw = 16, 32         # word_embed_dim, word_hidden_dim
    n_tags = 8
    T = 8                   # sentence length (tokens_tensor.shape[0])
    A = 5                   # char rows (lower-LSTM batch dim)

    key = jax.random.PRNGKey(0)
    keys = jax.random.split(key, 20)

    def u(k, shape, scale=0.1):
        return jax.random.uniform(k, shape, jnp.float32, -scale, scale)

    params = {
        "E_char": jax.random.normal(keys[0], (alphabet_size, Dc), jnp.float32),
        "E_word": jax.random.normal(keys[1], (vocab_size, Dw), jnp.float32),
        # lower LSTM (PyTorch shapes)
        "w_ih_l": u(keys[2], (4 * Hc, Dc)), "w_hh_l": u(keys[3], (4 * Hc, Hc)),
        "b_ih_l": u(keys[4], (4 * Hc,)),    "b_hh_l": u(keys[5], (4 * Hc,)),
        # upper LSTM forward
        "w_ih_uf": u(keys[6], (4 * Hw, Hc + Dw)), "w_hh_uf": u(keys[7], (4 * Hw, Hw)),
        "b_ih_uf": u(keys[8], (4 * Hw,)),         "b_hh_uf": u(keys[9], (4 * Hw,)),
        # upper LSTM reverse
        "w_ih_ub": u(keys[10], (4 * Hw, Hc + Dw)), "w_hh_ub": u(keys[11], (4 * Hw, Hw)),
        "b_ih_ub": u(keys[12], (4 * Hw,)),         "b_hh_ub": u(keys[13], (4 * Hw,)),
        # hidden_to_tag
        "W_tag": u(keys[14], (n_tags, 2 * Hw)), "b_tag": u(keys[15], (n_tags,)),
    }

    tokens = jax.random.randint(keys[16], (T,), 0, vocab_size)
    chars = jax.random.randint(keys[17], (A, T), 0, alphabet_size)

    packed, nt = pack_params(params)                 # once per parameter set
    out = customed_bilstm_forward(packed, tokens, chars, n_tags=nt)
    out = jax.block_until_ready(out)
    assert out.shape == (T, n_tags)

    ref = ref_forward(params, tokens, chars)
    # Kernel uses bf16 MXU operands (f32 accumulation / cell math); the f32
    # reference therefore differs by bf16 rounding compounded over 16 serial
    # recurrence steps -> looser tolerance than a pure-f32 comparison.
    np.testing.assert_allclose(np.asarray(out), np.asarray(ref), atol=2e-2, rtol=2e-2)

    print("KERNEL_OK")
</pallas_src>

<mosaic_0001>
module attributes {stable_mosaic.version = 11 : i64} {
  func.func @bilstm_kernel(%arg0: memref<8xi32, #tpu.memory_space<smem>>, %arg1: memref<8xi32, #tpu.memory_space<smem>>, %arg2: memref<20x1x8xf32, #tpu.memory_space<vmem>>, %arg3: memref<30x1x16xf32, #tpu.memory_space<vmem>>, %arg4: memref<25x64xbf16, #tpu.memory_space<vmem>>, %arg5: memref<65x256xbf16, #tpu.memory_space<vmem>>, %arg6: memref<65x128xbf16, #tpu.memory_space<vmem>>, %arg7: memref<8x128xf32, #tpu.memory_space<vmem>>, %arg8: memref<8x8xf32, #tpu.memory_space<vmem>>, %arg9: memref<8x16xf32, #tpu.memory_space<vmem>>, %arg10: memref<8x64xf32, #tpu.memory_space<vmem>>, %arg11: memref<8x16xf32, #tpu.memory_space<vmem>>, %arg12: memref<8x32xf32, #tpu.memory_space<vmem>>, %arg13: memref<8x32xf32, #tpu.memory_space<vmem>>, %arg14: memref<16x128xf32, #tpu.memory_space<vmem>>) attributes {dimension_semantics = [], scalar_prefetch = 0 : i64, scratch_operands = 7 : i64, tpu.core_type = #tpu.core_type<tc>} {
    %c0 = arith.constant 0 : index
    %0 = memref.load %arg0[%c0] : memref<8xi32, #tpu.memory_space<smem>>
    %1 = arith.index_cast %0 : i32 to index
    %c0_0 = arith.constant 0 : index
    %c0_1 = arith.constant 0 : index
    %2 = vector.load %arg2[%1, %c0_0, %c0_1] : memref<20x1x8xf32, #tpu.memory_space<vmem>>, vector<1x1x8xf32>
    %3 = vector.shape_cast %2 : vector<1x1x8xf32> to vector<1x8xf32>
    %c0_2 = arith.constant 0 : index
    %c0_3 = arith.constant 0 : index
    %4 = vector.load %arg8[%c0_2, %c0_3] : memref<8x8xf32, #tpu.memory_space<vmem>>, vector<1x8xf32>
    tpu.vector_store %arg8[%c0_2, %c0_3], %3 {strides = array<i32>} : memref<8x8xf32, #tpu.memory_space<vmem>>, vector<1x8xf32>,
    %c0_4 = arith.constant 0 : index
    %5 = memref.load %arg1[%c0_4] : memref<8xi32, #tpu.memory_space<smem>>
    %6 = arith.index_cast %5 : i32 to index
    %c0_5 = arith.constant 0 : index
    %c0_6 = arith.constant 0 : index
    %7 = vector.load %arg3[%6, %c0_5, %c0_6] : memref<30x1x16xf32, #tpu.memory_space<vmem>>, vector<1x1x16xf32>
    %8 = vector.shape_cast %7 : vector<1x1x16xf32> to vector<1x16xf32>
    %c0_7 = arith.constant 0 : index
    %c0_8 = arith.constant 0 : index
    %9 = vector.load %arg9[%c0_7, %c0_8] : memref<8x16xf32, #tpu.memory_space<vmem>>, vector<1x16xf32>
    tpu.vector_store %arg9[%c0_7, %c0_8], %8 {strides = array<i32>} : memref<8x16xf32, #tpu.memory_space<vmem>>, vector<1x16xf32>,
    %c1 = arith.constant 1 : index
    %10 = memref.load %arg0[%c1] : memref<8xi32, #tpu.memory_space<smem>>
    %11 = arith.index_cast %10 : i32 to index
    %c0_9 = arith.constant 0 : index
    %c0_10 = arith.constant 0 : index
    %12 = vector.load %arg2[%11, %c0_9, %c0_10] : memref<20x1x8xf32, #tpu.memory_space<vmem>>, vector<1x1x8xf32>
    %13 = vector.shape_cast %12 : vector<1x1x8xf32> to vector<1x8xf32>
    %c1_11 = arith.constant 1 : index
    %c0_12 = arith.constant 0 : index
    %14 = vector.load %arg8[%c1_11, %c0_12] : memref<8x8xf32, #tpu.memory_space<vmem>>, vector<1x8xf32>
    tpu.vector_store %arg8[%c1_11, %c0_12], %13 {strides = array<i32>} : memref<8x8xf32, #tpu.memory_space<vmem>>, vector<1x8xf32>,
    %c1_13 = arith.constant 1 : index
    %15 = memref.load %arg1[%c1_13] : memref<8xi32, #tpu.memory_space<smem>>
    %16 = arith.index_cast %15 : i32 to index
    %c0_14 = arith.constant 0 : index
    %c0_15 = arith.constant 0 : index
    %17 = vector.load %arg3[%16, %c0_14, %c0_15] : memref<30x1x16xf32, #tpu.memory_space<vmem>>, vector<1x1x16xf32>
    %18 = vector.shape_cast %17 : vector<1x1x16xf32> to vector<1x16xf32>
    %c1_16 = arith.constant 1 : index
    %c0_17 = arith.constant 0 : index
    %19 = vector.load %arg9[%c1_16, %c0_17] : memref<8x16xf32, #tpu.memory_space<vmem>>, vector<1x16xf32>
    tpu.vector_store %arg9[%c1_16, %c0_17], %18 {strides = array<i32>} : memref<8x16xf32, #tpu.memory_space<vmem>>, vector<1x16xf32>,
    %c2 = arith.constant 2 : index
    %20 = memref.load %arg0[%c2] : memref<8xi32, #tpu.memory_space<smem>>
    %21 = arith.index_cast %20 : i32 to index
    %c0_18 = arith.constant 0 : index
    %c0_19 = arith.constant 0 : index
    %22 = vector.load %arg2[%21, %c0_18, %c0_19] : memref<20x1x8xf32, #tpu.memory_space<vmem>>, vector<1x1x8xf32>
    %23 = vector.shape_cast %22 : vector<1x1x8xf32> to vector<1x8xf32>
    %c2_20 = arith.constant 2 : index
    %c0_21 = arith.constant 0 : index
    %24 = vector.load %arg8[%c2_20, %c0_21] : memref<8x8xf32, #tpu.memory_space<vmem>>, vector<1x8xf32>
    tpu.vector_store %arg8[%c2_20, %c0_21], %23 {strides = array<i32>} : memref<8x8xf32, #tpu.memory_space<vmem>>, vector<1x8xf32>,
    %c2_22 = arith.constant 2 : index
    %25 = memref.load %arg1[%c2_22] : memref<8xi32, #tpu.memory_space<smem>>
    %26 = arith.index_cast %25 : i32 to index
    %c0_23 = arith.constant 0 : index
    %c0_24 = arith.constant 0 : index
    %27 = vector.load %arg3[%26, %c0_23, %c0_24] : memref<30x1x16xf32, #tpu.memory_space<vmem>>, vector<1x1x16xf32>
    %28 = vector.shape_cast %27 : vector<1x1x16xf32> to vector<1x16xf32>
    %c2_25 = arith.constant 2 : index
    %c0_26 = arith.constant 0 : index
    %29 = vector.load %arg9[%c2_25, %c0_26] : memref<8x16xf32, #tpu.memory_space<vmem>>, vector<1x16xf32>
    tpu.vector_store %arg9[%c2_25, %c0_26], %28 {strides = array<i32>} : memref<8x16xf32, #tpu.memory_space<vmem>>, vector<1x16xf32>,
    %c3 = arith.constant 3 : index
    %30 = memref.load %arg0[%c3] : memref<8xi32, #tpu.memory_space<smem>>
    %31 = arith.index_cast %30 : i32 to index
    %c0_27 = arith.constant 0 : index
    %c0_28 = arith.constant 0 : index
    %32 = vector.load %arg2[%31, %c0_27, %c0_28] : memref<20x1x8xf32, #tpu.memory_space<vmem>>, vector<1x1x8xf32>
    %33 = vector.shape_cast %32 : vector<1x1x8xf32> to vector<1x8xf32>
    %c3_29 = arith.constant 3 : index
    %c0_30 = arith.constant 0 : index
    %34 = vector.load %arg8[%c3_29, %c0_30] : memref<8x8xf32, #tpu.memory_space<vmem>>, vector<1x8xf32>
    tpu.vector_store %arg8[%c3_29, %c0_30], %33 {strides = array<i32>} : memref<8x8xf32, #tpu.memory_space<vmem>>, vector<1x8xf32>,
    %c3_31 = arith.constant 3 : index
    %35 = memref.load %arg1[%c3_31] : memref<8xi32, #tpu.memory_space<smem>>
    %36 = arith.index_cast %35 : i32 to index
    %c0_32 = arith.constant 0 : index
    %c0_33 = arith.constant 0 : index
    %37 = vector.load %arg3[%36, %c0_32, %c0_33] : memref<30x1x16xf32, #tpu.memory_space<vmem>>, vector<1x1x16xf32>
    %38 = vector.shape_cast %37 : vector<1x1x16xf32> to vector<1x16xf32>
    %c3_34 = arith.constant 3 : index
    %c0_35 = arith.constant 0 : index
    %39 = vector.load %arg9[%c3_34, %c0_35] : memref<8x16xf32, #tpu.memory_space<vmem>>, vector<1x16xf32>
    tpu.vector_store %arg9[%c3_34, %c0_35], %38 {strides = array<i32>} : memref<8x16xf32, #tpu.memory_space<vmem>>, vector<1x16xf32>,
    %c4 = arith.constant 4 : index
    %40 = memref.load %arg0[%c4] : memref<8xi32, #tpu.memory_space<smem>>
    %41 = arith.index_cast %40 : i32 to index
    %c0_36 = arith.constant 0 : index
    %c0_37 = arith.constant 0 : index
    %42 = vector.load %arg2[%41, %c0_36, %c0_37] : memref<20x1x8xf32, #tpu.memory_space<vmem>>, vector<1x1x8xf32>
    %43 = vector.shape_cast %42 : vector<1x1x8xf32> to vector<1x8xf32>
    %c4_38 = arith.constant 4 : index
    %c0_39 = arith.constant 0 : index
    %44 = vector.load %arg8[%c4_38, %c0_39] : memref<8x8xf32, #tpu.memory_space<vmem>>, vector<1x8xf32>
    tpu.vector_store %arg8[%c4_38, %c0_39], %43 {strides = array<i32>} : memref<8x8xf32, #tpu.memory_space<vmem>>, vector<1x8xf32>,
    %c4_40 = arith.constant 4 : index
    %45 = memref.load %arg1[%c4_40] : memref<8xi32, #tpu.memory_space<smem>>
    %46 = arith.index_cast %45 : i32 to index
    %c0_41 = arith.constant 0 : index
    %c0_42 = arith.constant 0 : index
    %47 = vector.load %arg3[%46, %c0_41, %c0_42] : memref<30x1x16xf32, #tpu.memory_space<vmem>>, vector<1x1x16xf32>
    %48 = vector.shape_cast %47 : vector<1x1x16xf32> to vector<1x16xf32>
    %c4_43 = arith.constant 4 : index
    %c0_44 = arith.constant 0 : index
    %49 = vector.load %arg9[%c4_43, %c0_44] : memref<8x16xf32, #tpu.memory_space<vmem>>, vector<1x16xf32>
    tpu.vector_store %arg9[%c4_43, %c0_44], %48 {strides = array<i32>} : memref<8x16xf32, #tpu.memory_space<vmem>>, vector<1x16xf32>,
    %c5 = arith.constant 5 : index
    %50 = memref.load %arg0[%c5] : memref<8xi32, #tpu.memory_space<smem>>
    %51 = arith.index_cast %50 : i32 to index
    %c0_45 = arith.constant 0 : index
    %c0_46 = arith.constant 0 : index
    %52 = vector.load %arg2[%51, %c0_45, %c0_46] : memref<20x1x8xf32, #tpu.memory_space<vmem>>, vector<1x1x8xf32>
    %53 = vector.shape_cast %52 : vector<1x1x8xf32> to vector<1x8xf32>
    %c5_47 = arith.constant 5 : index
    %c0_48 = arith.constant 0 : index
    %54 = vector.load %arg8[%c5_47, %c0_48] : memref<8x8xf32, #tpu.memory_space<vmem>>, vector<1x8xf32>
    tpu.vector_store %arg8[%c5_47, %c0_48], %53 {strides = array<i32>} : memref<8x8xf32, #tpu.memory_space<vmem>>, vector<1x8xf32>,
    %c5_49 = arith.constant 5 : index
    %55 = memref.load %arg1[%c5_49] : memref<8xi32, #tpu.memory_space<smem>>
    %56 = arith.index_cast %55 : i32 to index
    %c0_50 = arith.constant 0 : index
    %c0_51 = arith.constant 0 : index
    %57 = vector.load %arg3[%56, %c0_50, %c0_51] : memref<30x1x16xf32, #tpu.memory_space<vmem>>, vector<1x1x16xf32>
    %58 = vector.shape_cast %57 : vector<1x1x16xf32> to vector<1x16xf32>
    %c5_52 = arith.constant 5 : index
    %c0_53 = arith.constant 0 : index
    %59 = vector.load %arg9[%c5_52, %c0_53] : memref<8x16xf32, #tpu.memory_space<vmem>>, vector<1x16xf32>
    tpu.vector_store %arg9[%c5_52, %c0_53], %58 {strides = array<i32>} : memref<8x16xf32, #tpu.memory_space<vmem>>, vector<1x16xf32>,
    %c6 = arith.constant 6 : index
    %60 = memref.load %arg0[%c6] : memref<8xi32, #tpu.memory_space<smem>>
    %61 = arith.index_cast %60 : i32 to index
    %c0_54 = arith.constant 0 : index
    %c0_55 = arith.constant 0 : index
    %62 = vector.load %arg2[%61, %c0_54, %c0_55] : memref<20x1x8xf32, #tpu.memory_space<vmem>>, vector<1x1x8xf32>
    %63 = vector.shape_cast %62 : vector<1x1x8xf32> to vector<1x8xf32>
    %c6_56 = arith.constant 6 : index
    %c0_57 = arith.constant 0 : index
    %64 = vector.load %arg8[%c6_56, %c0_57] : memref<8x8xf32, #tpu.memory_space<vmem>>, vector<1x8xf32>
    tpu.vector_store %arg8[%c6_56, %c0_57], %63 {strides = array<i32>} : memref<8x8xf32, #tpu.memory_space<vmem>>, vector<1x8xf32>,
    %c6_58 = arith.constant 6 : index
    %65 = memref.load %arg1[%c6_58] : memref<8xi32, #tpu.memory_space<smem>>
    %66 = arith.index_cast %65 : i32 to index
    %c0_59 = arith.constant 0 : index
    %c0_60 = arith.constant 0 : index
    %67 = vector.load %arg3[%66, %c0_59, %c0_60] : memref<30x1x16xf32, #tpu.memory_space<vmem>>, vector<1x1x16xf32>
    %68 = vector.shape_cast %67 : vector<1x1x16xf32> to vector<1x16xf32>
    %c6_61 = arith.constant 6 : index
    %c0_62 = arith.constant 0 : index
    %69 = vector.load %arg9[%c6_61, %c0_62] : memref<8x16xf32, #tpu.memory_space<vmem>>, vector<1x16xf32>
    tpu.vector_store %arg9[%c6_61, %c0_62], %68 {strides = array<i32>} : memref<8x16xf32, #tpu.memory_space<vmem>>, vector<1x16xf32>,
    %c7 = arith.constant 7 : index
    %70 = memref.load %arg0[%c7] : memref<8xi32, #tpu.memory_space<smem>>
    %71 = arith.index_cast %70 : i32 to index
    %c0_63 = arith.constant 0 : index
    %c0_64 = arith.constant 0 : index
    %72 = vector.load %arg2[%71, %c0_63, %c0_64] : memref<20x1x8xf32, #tpu.memory_space<vmem>>, vector<1x1x8xf32>
    %73 = vector.shape_cast %72 : vector<1x1x8xf32> to vector<1x8xf32>
    %c7_65 = arith.constant 7 : index
    %c0_66 = arith.constant 0 : index
    %74 = vector.load %arg8[%c7_65, %c0_66] : memref<8x8xf32, #tpu.memory_space<vmem>>, vector<1x8xf32>
    tpu.vector_store %arg8[%c7_65, %c0_66], %73 {strides = array<i32>} : memref<8x8xf32, #tpu.memory_space<vmem>>, vector<1x8xf32>,
    %c7_67 = arith.constant 7 : index
    %75 = memref.load %arg1[%c7_67] : memref<8xi32, #tpu.memory_space<smem>>
    %76 = arith.index_cast %75 : i32 to index
    %c0_68 = arith.constant 0 : index
    %c0_69 = arith.constant 0 : index
    %77 = vector.load %arg3[%76, %c0_68, %c0_69] : memref<30x1x16xf32, #tpu.memory_space<vmem>>, vector<1x1x16xf32>
    %78 = vector.shape_cast %77 : vector<1x1x16xf32> to vector<1x16xf32>
    %c7_70 = arith.constant 7 : index
    %c0_71 = arith.constant 0 : index
    %79 = vector.load %arg9[%c7_70, %c0_71] : memref<8x16xf32, #tpu.memory_space<vmem>>, vector<1x16xf32>
    tpu.vector_store %arg9[%c7_70, %c0_71], %78 {strides = array<i32>} : memref<8x16xf32, #tpu.memory_space<vmem>>, vector<1x16xf32>,
    %c0_72 = arith.constant 0 : index
    %c0_73 = arith.constant 0 : index
    %80 = vector.load %arg8[%c0_72, %c0_73] : memref<8x8xf32, #tpu.memory_space<vmem>>, vector<8x8xf32>
    %81 = arith.truncf %80 : vector<8x8xf32> to vector<8x8xbf16>
    %c0_74 = arith.constant 0 : index
    %c0_75 = arith.constant 0 : index
    %82 = vector.load %arg4[%c0_74, %c0_75] : memref<25x64xbf16, #tpu.memory_space<vmem>>, vector<8x64xbf16>
    %cst = arith.constant dense<0.000000e+00> : vector<8x64xf32>
    %83 = tpu.matmul %81, %82, %cst {dimension_numbers = #tpu.dot_dimension_numbers<[1], [0], [0], [1], [0, 0, 1, 1], [], []>} : vector<8x8xbf16>, vector<8x64xbf16>, vector<8x64xf32> -> vector<8x64xf32>
    %c24 = arith.constant 24 : index
    %c0_76 = arith.constant 0 : index
    %84 = vector.load %arg4[%c24, %c0_76] : memref<25x64xbf16, #tpu.memory_space<vmem>>, vector<1x64xbf16>
    %85 = arith.extf %84 : vector<1x64xbf16> to vector<1x64xf32>
    %86 = vector.broadcast %85 : vector<1x64xf32> to vector<8x64xf32>
    %87 = arith.addf %83, %86 : vector<8x64xf32>
    %c0_77 = arith.constant 0 : index
    %c0_78 = arith.constant 0 : index
    %88 = vector.load %arg10[%c0_77, %c0_78] : memref<8x64xf32, #tpu.memory_space<vmem>>, vector<8x64xf32>
    tpu.vector_store %arg10[%c0_77, %c0_78], %87 {strides = array<i32>} : memref<8x64xf32, #tpu.memory_space<vmem>>, vector<8x64xf32>,
    %c8 = arith.constant 8 : index
    %c0_79 = arith.constant 0 : index
    %89 = vector.load %arg4[%c8, %c0_79] : memref<25x64xbf16, #tpu.memory_space<vmem>>, vector<16x64xbf16>
    %cst_80 = arith.constant 0.000000e+00 : f32
    %90 = vector.broadcast %cst_80 : f32 to vector<1x16xf32>
    %cst_81 = arith.constant 0.000000e+00 : f32
    %91 = vector.broadcast %cst_81 : f32 to vector<1x16xf32>
    %c0_82 = arith.constant 0 : index
    %c0_83 = arith.constant 0 : index
    %92 = vector.load %arg10[%c0_82, %c0_83] : memref<8x64xf32, #tpu.memory_space<vmem>>, vector<1x64xf32>
    %93 = arith.truncf %90 : vector<1x16xf32> to vector<1x16xbf16>
    %cst_84 = arith.constant dense<0.000000e+00> : vector<1x64xf32>
    %94 = tpu.matmul %93, %89, %cst_84 {dimension_numbers = #tpu.dot_dimension_numbers<[1], [0], [0], [1], [0, 0, 1, 1], [], []>} : vector<1x16xbf16>, vector<16x64xbf16>, vector<1x64xf32> -> vector<1x64xf32>
    %95 = arith.addf %92, %94 : vector<1x64xf32>
    %96 = arith.negf %95 : vector<1x64xf32>
    %97 = math.exp %96 : vector<1x64xf32>
    %cst_85 = arith.constant 1.000000e+00 : f32
    %98 = vector.broadcast %cst_85 : f32 to vector<1x64xf32>
    %99 = arith.addf %98, %97 : vector<1x64xf32>
    %100 = arith.divf %98, %99 : vector<1x64xf32>
    %101 = vector.extract_strided_slice %95 {offsets = [0, 32], sizes = [1, 16], strides = [1, 1]} : vector<1x64xf32> to vector<1x16xf32>
    %102 = math.tanh %101 : vector<1x16xf32>
    %103 = vector.extract_strided_slice %100 {offsets = [0, 16], sizes = [1, 16], strides = [1, 1]} : vector<1x64xf32> to vector<1x16xf32>
    %104 = arith.mulf %103, %91 : vector<1x16xf32>
    %105 = vector.extract_strided_slice %100 {offsets = [0, 0], sizes = [1, 16], strides = [1, 1]} : vector<1x64xf32> to vector<1x16xf32>
    %106 = arith.mulf %105, %102 : vector<1x16xf32>
    %107 = arith.addf %104, %106 : vector<1x16xf32>
    %108 = vector.extract_strided_slice %100 {offsets = [0, 48], sizes = [1, 16], strides = [1, 1]} : vector<1x64xf32> to vector<1x16xf32>
    %109 = math.tanh %107 : vector<1x16xf32>
    %110 = arith.mulf %108, %109 : vector<1x16xf32>
    %c0_86 = arith.constant 0 : index
    %c0_87 = arith.constant 0 : index
    %111 = vector.load %arg11[%c0_86, %c0_87] : memref<8x16xf32, #tpu.memory_space<vmem>>, vector<1x16xf32>
    tpu.vector_store %arg11[%c0_86, %c0_87], %110 {strides = array<i32>} : memref<8x16xf32, #tpu.memory_space<vmem>>, vector<1x16xf32>,
    %c1_88 = arith.constant 1 : index
    %c0_89 = arith.constant 0 : index
    %112 = vector.load %arg10[%c1_88, %c0_89] : memref<8x64xf32, #tpu.memory_space<vmem>>, vector<1x64xf32>
    %113 = arith.truncf %110 : vector<1x16xf32> to vector<1x16xbf16>
    %cst_90 = arith.constant dense<0.000000e+00> : vector<1x64xf32>
    %114 = tpu.matmul %113, %89, %cst_90 {dimension_numbers = #tpu.dot_dimension_numbers<[1], [0], [0], [1], [0, 0, 1, 1], [], []>} : vector<1x16xbf16>, vector<16x64xbf16>, vector<1x64xf32> -> vector<1x64xf32>
    %115 = arith.addf %112, %114 : vector<1x64xf32>
    %116 = arith.negf %115 : vector<1x64xf32>
    %117 = math.exp %116 : vector<1x64xf32>
    %cst_91 = arith.constant 1.000000e+00 : f32
    %118 = vector.broadcast %cst_91 : f32 to vector<1x64xf32>
    %119 = arith.addf %118, %117 : vector<1x64xf32>
    %120 = arith.divf %118, %119 : vector<1x64xf32>
    %121 = vector.extract_strided_slice %115 {offsets = [0, 32], sizes = [1, 16], strides = [1, 1]} : vector<1x64xf32> to vector<1x16xf32>
    %122 = math.tanh %121 : vector<1x16xf32>
    %123 = vector.extract_strided_slice %120 {offsets = [0, 16], sizes = [1, 16], strides = [1, 1]} : vector<1x64xf32> to vector<1x16xf32>
    %124 = arith.mulf %123, %107 : vector<1x16xf32>
    %125 = vector.extract_strided_slice %120 {offsets = [0, 0], sizes = [1, 16], strides = [1, 1]} : vector<1x64xf32> to vector<1x16xf32>
    %126 = arith.mulf %125, %122 : vector<1x16xf32>
    %127 = arith.addf %124, %126 : vector<1x16xf32>
    %128 = vector.extract_strided_slice %120 {offsets = [0, 48], sizes = [1, 16], strides = [1, 1]} : vector<1x64xf32> to vector<1x16xf32>
    %129 = math.tanh %127 : vector<1x16xf32>
    %130 = arith.mulf %128, %129 : vector<1x16xf32>
    %c1_92 = arith.constant 1 : index
    %c0_93 = arith.constant 0 : index
    %131 = vector.load %arg11[%c1_92, %c0_93] : memref<8x16xf32, #tpu.memory_space<vmem>>, vector<1x16xf32>
    tpu.vector_store %arg11[%c1_92, %c0_93], %130 {strides = array<i32>} : memref<8x16xf32, #tpu.memory_space<vmem>>, vector<1x16xf32>,
    %c2_94 = arith.constant 2 : index
    %c0_95 = arith.constant 0 : index
    %132 = vector.load %arg10[%c2_94, %c0_95] : memref<8x64xf32, #tpu.memory_space<vmem>>, vector<1x64xf32>
    %133 = arith.truncf %130 : vector<1x16xf32> to vector<1x16xbf16>
    %cst_96 = arith.constant dense<0.000000e+00> : vector<1x64xf32>
    %134 = tpu.matmul %133, %89, %cst_96 {dimension_numbers = #tpu.dot_dimension_numbers<[1], [0], [0], [1], [0, 0, 1, 1], [], []>} : vector<1x16xbf16>, vector<16x64xbf16>, vector<1x64xf32> -> vector<1x64xf32>
    %135 = arith.addf %132, %134 : vector<1x64xf32>
    %136 = arith.negf %135 : vector<1x64xf32>
    %137 = math.exp %136 : vector<1x64xf32>
    %cst_97 = arith.constant 1.000000e+00 : f32
    %138 = vector.broadcast %cst_97 : f32 to vector<1x64xf32>
    %139 = arith.addf %138, %137 : vector<1x64xf32>
    %140 = arith.divf %138, %139 : vector<1x64xf32>
    %141 = vector.extract_strided_slice %135 {offsets = [0, 32], sizes = [1, 16], strides = [1, 1]} : vector<1x64xf32> to vector<1x16xf32>
    %142 = math.tanh %141 : vector<1x16xf32>
    %143 = vector.extract_strided_slice %140 {offsets = [0, 16], sizes = [1, 16], strides = [1, 1]} : vector<1x64xf32> to vector<1x16xf32>
    %144 = arith.mulf %143, %127 : vector<1x16xf32>
    %145 = vector.extract_strided_slice %140 {offsets = [0, 0], sizes = [1, 16], strides = [1, 1]} : vector<1x64xf32> to vector<1x16xf32>
    %146 = arith.mulf %145, %142 : vector<1x16xf32>
    %147 = arith.addf %144, %146 : vector<1x16xf32>
    %148 = vector.extract_strided_slice %140 {offsets = [0, 48], sizes = [1, 16], strides = [1, 1]} : vector<1x64xf32> to vector<1x16xf32>
    %149 = math.tanh %147 : vector<1x16xf32>
    %150 = arith.mulf %148, %149 : vector<1x16xf32>
    %c2_98 = arith.constant 2 : index
    %c0_99 = arith.constant 0 : index
    %151 = vector.load %arg11[%c2_98, %c0_99] : memref<8x16xf32, #tpu.memory_space<vmem>>, vector<1x16xf32>
    tpu.vector_store %arg11[%c2_98, %c0_99], %150 {strides = array<i32>} : memref<8x16xf32, #tpu.memory_space<vmem>>, vector<1x16xf32>,
    %c3_100 = arith.constant 3 : index
    %c0_101 = arith.constant 0 : index
    %152 = vector.load %arg10[%c3_100, %c0_101] : memref<8x64xf32, #tpu.memory_space<vmem>>, vector<1x64xf32>
    %153 = arith.truncf %150 : vector<1x16xf32> to vector<1x16xbf16>
    %cst_102 = arith.constant dense<0.000000e+00> : vector<1x64xf32>
    %154 = tpu.matmul %153, %89, %cst_102 {dimension_numbers = #tpu.dot_dimension_numbers<[1], [0], [0], [1], [0, 0, 1, 1], [], []>} : vector<1x16xbf16>, vector<16x64xbf16>, vector<1x64xf32> -> vector<1x64xf32>
    %155 = arith.addf %152, %154 : vector<1x64xf32>
    %156 = arith.negf %155 : vector<1x64xf32>
    %157 = math.exp %156 : vector<1x64xf32>
    %cst_103 = arith.constant 1.000000e+00 : f32
    %158 = vector.broadcast %cst_103 : f32 to vector<1x64xf32>
    %159 = arith.addf %158, %157 : vector<1x64xf32>
    %160 = arith.divf %158, %159 : vector<1x64xf32>
    %161 = vector.extract_strided_slice %155 {offsets = [0, 32], sizes = [1, 16], strides = [1, 1]} : vector<1x64xf32> to vector<1x16xf32>
    %162 = math.tanh %161 : vector<1x16xf32>
    %163 = vector.extract_strided_slice %160 {offsets = [0, 16], sizes = [1, 16], strides = [1, 1]} : vector<1x64xf32> to vector<1x16xf32>
    %164 = arith.mulf %163, %147 : vector<1x16xf32>
    %165 = vector.extract_strided_slice %160 {offsets = [0, 0], sizes = [1, 16], strides = [1, 1]} : vector<1x64xf32> to vector<1x16xf32>
    %166 = arith.mulf %165, %162 : vector<1x16xf32>
    %167 = arith.addf %164, %166 : vector<1x16xf32>
    %168 = vector.extract_strided_slice %160 {offsets = [0, 48], sizes = [1, 16], strides = [1, 1]} : vector<1x64xf32> to vector<1x16xf32>
    %169 = math.tanh %167 : vector<1x16xf32>
    %170 = arith.mulf %168, %169 : vector<1x16xf32>
    %c3_104 = arith.constant 3 : index
    %c0_105 = arith.constant 0 : index
    %171 = vector.load %arg11[%c3_104, %c0_105] : memref<8x16xf32, #tpu.memory_space<vmem>>, vector<1x16xf32>
    tpu.vector_store %arg11[%c3_104, %c0_105], %170 {strides = array<i32>} : memref<8x16xf32, #tpu.memory_space<vmem>>, vector<1x16xf32>,
    %c4_106 = arith.constant 4 : index
    %c0_107 = arith.constant 0 : index
    %172 = vector.load %arg10[%c4_106, %c0_107] : memref<8x64xf32, #tpu.memory_space<vmem>>, vector<1x64xf32>
    %173 = arith.truncf %170 : vector<1x16xf32> to vector<1x16xbf16>
    %cst_108 = arith.constant dense<0.000000e+00> : vector<1x64xf32>
    %174 = tpu.matmul %173, %89, %cst_108 {dimension_numbers = #tpu.dot_dimension_numbers<[1], [0], [0], [1], [0, 0, 1, 1], [], []>} : vector<1x16xbf16>, vector<16x64xbf16>, vector<1x64xf32> -> vector<1x64xf32>
    %175 = arith.addf %172, %174 : vector<1x64xf32>
    %176 = arith.negf %175 : vector<1x64xf32>
    %177 = math.exp %176 : vector<1x64xf32>
    %cst_109 = arith.constant 1.000000e+00 : f32
    %178 = vector.broadcast %cst_109 : f32 to vector<1x64xf32>
    %179 = arith.addf %178, %177 : vector<1x64xf32>
    %180 = arith.divf %178, %179 : vector<1x64xf32>
    %181 = vector.extract_strided_slice %175 {offsets = [0, 32], sizes = [1, 16], strides = [1, 1]} : vector<1x64xf32> to vector<1x16xf32>
    %182 = math.tanh %181 : vector<1x16xf32>
    %183 = vector.extract_strided_slice %180 {offsets = [0, 16], sizes = [1, 16], strides = [1, 1]} : vector<1x64xf32> to vector<1x16xf32>
    %184 = arith.mulf %183, %167 : vector<1x16xf32>
    %185 = vector.extract_strided_slice %180 {offsets = [0, 0], sizes = [1, 16], strides = [1, 1]} : vector<1x64xf32> to vector<1x16xf32>
    %186 = arith.mulf %185, %182 : vector<1x16xf32>
    %187 = arith.addf %184, %186 : vector<1x16xf32>
    %188 = vector.extract_strided_slice %180 {offsets = [0, 48], sizes = [1, 16], strides = [1, 1]} : vector<1x64xf32> to vector<1x16xf32>
    %189 = math.tanh %187 : vector<1x16xf32>
    %190 = arith.mulf %188, %189 : vector<1x16xf32>
    %c4_110 = arith.constant 4 : index
    %c0_111 = arith.constant 0 : index
    %191 = vector.load %arg11[%c4_110, %c0_111] : memref<8x16xf32, #tpu.memory_space<vmem>>, vector<1x16xf32>
    tpu.vector_store %arg11[%c4_110, %c0_111], %190 {strides = array<i32>} : memref<8x16xf32, #tpu.memory_space<vmem>>, vector<1x16xf32>,
    %c5_112 = arith.constant 5 : index
    %c0_113 = arith.constant 0 : index
    %192 = vector.load %arg10[%c5_112, %c0_113] : memref<8x64xf32, #tpu.memory_space<vmem>>, vector<1x64xf32>
    %193 = arith.truncf %190 : vector<1x16xf32> to vector<1x16xbf16>
    %cst_114 = arith.constant dense<0.000000e+00> : vector<1x64xf32>
    %194 = tpu.matmul %193, %89, %cst_114 {dimension_numbers = #tpu.dot_dimension_numbers<[1], [0], [0], [1], [0, 0, 1, 1], [], []>} : vector<1x16xbf16>, vector<16x64xbf16>, vector<1x64xf32> -> vector<1x64xf32>
    %195 = arith.addf %192, %194 : vector<1x64xf32>
    %196 = arith.negf %195 : vector<1x64xf32>
    %197 = math.exp %196 : vector<1x64xf32>
    %cst_115 = arith.constant 1.000000e+00 : f32
    %198 = vector.broadcast %cst_115 : f32 to vector<1x64xf32>
    %199 = arith.addf %198, %197 : vector<1x64xf32>
    %200 = arith.divf %198, %199 : vector<1x64xf32>
    %201 = vector.extract_strided_slice %195 {offsets = [0, 32], sizes = [1, 16], strides = [1, 1]} : vector<1x64xf32> to vector<1x16xf32>
    %202 = math.tanh %201 : vector<1x16xf32>
    %203 = vector.extract_strided_slice %200 {offsets = [0, 16], sizes = [1, 16], strides = [1, 1]} : vector<1x64xf32> to vector<1x16xf32>
    %204 = arith.mulf %203, %187 : vector<1x16xf32>
    %205 = vector.extract_strided_slice %200 {offsets = [0, 0], sizes = [1, 16], strides = [1, 1]} : vector<1x64xf32> to vector<1x16xf32>
    %206 = arith.mulf %205, %202 : vector<1x16xf32>
    %207 = arith.addf %204, %206 : vector<1x16xf32>
    %208 = vector.extract_strided_slice %200 {offsets = [0, 48], sizes = [1, 16], strides = [1, 1]} : vector<1x64xf32> to vector<1x16xf32>
    %209 = math.tanh %207 : vector<1x16xf32>
    %210 = arith.mulf %208, %209 : vector<1x16xf32>
    %c5_116 = arith.constant 5 : index
    %c0_117 = arith.constant 0 : index
    %211 = vector.load %arg11[%c5_116, %c0_117] : memref<8x16xf32, #tpu.memory_space<vmem>>, vector<1x16xf32>
    tpu.vector_store %arg11[%c5_116, %c0_117], %210 {strides = array<i32>} : memref<8x16xf32, #tpu.memory_space<vmem>>, vector<1x16xf32>,
    %c6_118 = arith.constant 6 : index
    %c0_119 = arith.constant 0 : index
    %212 = vector.load %arg10[%c6_118, %c0_119] : memref<8x64xf32, #tpu.memory_space<vmem>>, vector<1x64xf32>
    %213 = arith.truncf %210 : vector<1x16xf32> to vector<1x16xbf16>
    %cst_120 = arith.constant dense<0.000000e+00> : vector<1x64xf32>
    %214 = tpu.matmul %213, %89, %cst_120 {dimension_numbers = #tpu.dot_dimension_numbers<[1], [0], [0], [1], [0, 0, 1, 1], [], []>} : vector<1x16xbf16>, vector<16x64xbf16>, vector<1x64xf32> -> vector<1x64xf32>
    %215 = arith.addf %212, %214 : vector<1x64xf32>
    %216 = arith.negf %215 : vector<1x64xf32>
    %217 = math.exp %216 : vector<1x64xf32>
    %cst_121 = arith.constant 1.000000e+00 : f32
    %218 = vector.broadcast %cst_121 : f32 to vector<1x64xf32>
    %219 = arith.addf %218, %217 : vector<1x64xf32>
    %220 = arith.divf %218, %219 : vector<1x64xf32>
    %221 = vector.extract_strided_slice %215 {offsets = [0, 32], sizes = [1, 16], strides = [1, 1]} : vector<1x64xf32> to vector<1x16xf32>
    %222 = math.tanh %221 : vector<1x16xf32>
    %223 = vector.extract_strided_slice %220 {offsets = [0, 16], sizes = [1, 16], strides = [1, 1]} : vector<1x64xf32> to vector<1x16xf32>
    %224 = arith.mulf %223, %207 : vector<1x16xf32>
    %225 = vector.extract_strided_slice %220 {offsets = [0, 0], sizes = [1, 16], strides = [1, 1]} : vector<1x64xf32> to vector<1x16xf32>
    %226 = arith.mulf %225, %222 : vector<1x16xf32>
    %227 = arith.addf %224, %226 : vector<1x16xf32>
    %228 = vector.extract_strided_slice %220 {offsets = [0, 48], sizes = [1, 16], strides = [1, 1]} : vector<1x64xf32> to vector<1x16xf32>
    %229 = math.tanh %227 : vector<1x16xf32>
    %230 = arith.mulf %228, %229 : vector<1x16xf32>
    %c6_122 = arith.constant 6 : index
    %c0_123 = arith.constant 0 : index
    %231 = vector.load %arg11[%c6_122, %c0_123] : memref<8x16xf32, #tpu.memory_space<vmem>>, vector<1x16xf32>
    tpu.vector_store %arg11[%c6_122, %c0_123], %230 {strides = array<i32>} : memref<8x16xf32, #tpu.memory_space<vmem>>, vector<1x16xf32>,
    %c7_124 = arith.constant 7 : index
    %c0_125 = arith.constant 0 : index
    %232 = vector.load %arg10[%c7_124, %c0_125] : memref<8x64xf32, #tpu.memory_space<vmem>>, vector<1x64xf32>
    %233 = arith.truncf %230 : vector<1x16xf32> to vector<1x16xbf16>
    %cst_126 = arith.constant dense<0.000000e+00> : vector<1x64xf32>
    %234 = tpu.matmul %233, %89, %cst_126 {dimension_numbers = #tpu.dot_dimension_numbers<[1], [0], [0], [1], [0, 0, 1, 1], [], []>} : vector<1x16xbf16>, vector<16x64xbf16>, vector<1x64xf32> -> vector<1x64xf32>
    %235 = arith.addf %232, %234 : vector<1x64xf32>
    %236 = arith.negf %235 : vector<1x64xf32>
    %237 = math.exp %236 : vector<1x64xf32>
    %cst_127 = arith.constant 1.000000e+00 : f32
    %238 = vector.broadcast %cst_127 : f32 to vector<1x64xf32>
    %239 = arith.addf %238, %237 : vector<1x64xf32>
    %240 = arith.divf %238, %239 : vector<1x64xf32>
    %241 = vector.extract_strided_slice %235 {offsets = [0, 32], sizes = [1, 16], strides = [1, 1]} : vector<1x64xf32> to vector<1x16xf32>
    %242 = math.tanh %241 : vector<1x16xf32>
    %243 = vector.extract_strided_slice %240 {offsets = [0, 16], sizes = [1, 16], strides = [1, 1]} : vector<1x64xf32> to vector<1x16xf32>
    %244 = arith.mulf %243, %227 : vector<1x16xf32>
    %245 = vector.extract_strided_slice %240 {offsets = [0, 0], sizes = [1, 16], strides = [1, 1]} : vector<1x64xf32> to vector<1x16xf32>
    %246 = arith.mulf %245, %242 : vector<1x16xf32>
    %247 = arith.addf %244, %246 : vector<1x16xf32>
    %248 = vector.extract_strided_slice %240 {offsets = [0, 48], sizes = [1, 16], strides = [1, 1]} : vector<1x64xf32> to vector<1x16xf32>
    %249 = math.tanh %247 : vector<1x16xf32>
    %250 = arith.mulf %248, %249 : vector<1x16xf32>
    %c7_128 = arith.constant 7 : index
    %c0_129 = arith.constant 0 : index
    %251 = vector.load %arg11[%c7_128, %c0_129] : memref<8x16xf32, #tpu.memory_space<vmem>>, vector<1x16xf32>
    tpu.vector_store %arg11[%c7_128, %c0_129], %250 {strides = array<i32>} : memref<8x16xf32, #tpu.memory_space<vmem>>, vector<1x16xf32>,
    %c0_130 = arith.constant 0 : index
    %c0_131 = arith.constant 0 : index
    %252 = vector.load %arg11[%c0_130, %c0_131] : memref<8x16xf32, #tpu.memory_space<vmem>>, vector<8x16xf32>
    %253 = arith.truncf %252 : vector<8x16xf32> to vector<8x16xbf16>
    %c0_132 = arith.constant 0 : index
    %c0_133 = arith.constant 0 : index
    %254 = vector.load %arg5[%c0_132, %c0_133] : memref<65x256xbf16, #tpu.memory_space<vmem>>, vector<16x256xbf16>
    %cst_134 = arith.constant dense<0.000000e+00> : vector<8x256xf32>
    %255 = tpu.matmul %253, %254, %cst_134 {dimension_numbers = #tpu.dot_dimension_numbers<[1], [0], [0], [1], [0, 0, 1, 1], [], []>} : vector<8x16xbf16>, vector<16x256xbf16>, vector<8x256xf32> -> vector<8x256xf32>
    %c0_135 = arith.constant 0 : index
    %c0_136 = arith.constant 0 : index
    %256 = vector.load %arg9[%c0_135, %c0_136] : memref<8x16xf32, #tpu.memory_space<vmem>>, vector<8x16xf32>
    %257 = arith.truncf %256 : vector<8x16xf32> to vector<8x16xbf16>
    %c16 = arith.constant 16 : index
    %c0_137 = arith.constant 0 : index
    %258 = vector.load %arg5[%c16, %c0_137] : memref<65x256xbf16, #tpu.memory_space<vmem>>, vector<16x256xbf16>
    %cst_138 = arith.constant dense<0.000000e+00> : vector<8x256xf32>
    %259 = tpu.matmul %257, %258, %cst_138 {dimension_numbers = #tpu.dot_dimension_numbers<[1], [0], [0], [1], [0, 0, 1, 1], [], []>} : vector<8x16xbf16>, vector<16x256xbf16>, vector<8x256xf32> -> vector<8x256xf32>
    %260 = arith.addf %255, %259 : vector<8x256xf32>
    %c64 = arith.constant 64 : index
    %c0_139 = arith.constant 0 : index
    %261 = vector.load %arg5[%c64, %c0_139] : memref<65x256xbf16, #tpu.memory_space<vmem>>, vector<1x256xbf16>
    %262 = arith.extf %261 : vector<1x256xbf16> to vector<1x256xf32>
    %263 = vector.broadcast %262 : vector<1x256xf32> to vector<8x256xf32>
    %264 = arith.addf %260, %263 : vector<8x256xf32>
    %265 = vector.extract_strided_slice %264 {offsets = [0, 0], sizes = [1, 128], strides = [1, 1]} : vector<8x256xf32> to vector<1x128xf32>
    %c0_140 = arith.constant 0 : index
    %c0_141 = arith.constant 0 : index
    %266 = vector.load %arg14[%c0_140, %c0_141] : memref<16x128xf32, #tpu.memory_space<vmem>>, vector<1x128xf32>
    tpu.vector_store %arg14[%c0_140, %c0_141], %265 {strides = array<i32>} : memref<16x128xf32, #tpu.memory_space<vmem>>, vector<1x128xf32>,
    %267 = vector.extract_strided_slice %264 {offsets = [7, 128], sizes = [1, 128], strides = [1, 1]} : vector<8x256xf32> to vector<1x128xf32>
    %c1_142 = arith.constant 1 : index
    %c0_143 = arith.constant 0 : index
    %268 = vector.load %arg14[%c1_142, %c0_143] : memref<16x128xf32, #tpu.memory_space<vmem>>, vector<1x128xf32>
    tpu.vector_store %arg14[%c1_142, %c0_143], %267 {strides = array<i32>} : memref<16x128xf32, #tpu.memory_space<vmem>>, vector<1x128xf32>,
    %269 = vector.extract_strided_slice %264 {offsets = [1, 0], sizes = [1, 128], strides = [1, 1]} : vector<8x256xf32> to vector<1x128xf32>
    %c2_144 = arith.constant 2 : index
    %c0_145 = arith.constant 0 : index
    %270 = vector.load %arg14[%c2_144, %c0_145] : memref<16x128xf32, #tpu.memory_space<vmem>>, vector<1x128xf32>
    tpu.vector_store %arg14[%c2_144, %c0_145], %269 {strides = array<i32>} : memref<16x128xf32, #tpu.memory_space<vmem>>, vector<1x128xf32>,
    %271 = vector.extract_strided_slice %264 {offsets = [6, 128], sizes = [1, 128], strides = [1, 1]} : vector<8x256xf32> to vector<1x128xf32>
    %c3_146 = arith.constant 3 : index
    %c0_147 = arith.constant 0 : index
    %272 = vector.load %arg14[%c3_146, %c0_147] : memref<16x128xf32, #tpu.memory_space<vmem>>, vector<1x128xf32>
    tpu.vector_store %arg14[%c3_146, %c0_147], %271 {strides = array<i32>} : memref<16x128xf32, #tpu.memory_space<vmem>>, vector<1x128xf32>,
    %273 = vector.extract_strided_slice %264 {offsets = [2, 0], sizes = [1, 128], strides = [1, 1]} : vector<8x256xf32> to vector<1x128xf32>
    %c4_148 = arith.constant 4 : index
    %c0_149 = arith.constant 0 : index
    %274 = vector.load %arg14[%c4_148, %c0_149] : memref<16x128xf32, #tpu.memory_space<vmem>>, vector<1x128xf32>
    tpu.vector_store %arg14[%c4_148, %c0_149], %273 {strides = array<i32>} : memref<16x128xf32, #tpu.memory_space<vmem>>, vector<1x128xf32>,
    %275 = vector.extract_strided_slice %264 {offsets = [5, 128], sizes = [1, 128], strides = [1, 1]} : vector<8x256xf32> to vector<1x128xf32>
    %c5_150 = arith.constant 5 : index
    %c0_151 = arith.constant 0 : index
    %276 = vector.load %arg14[%c5_150, %c0_151] : memref<16x128xf32, #tpu.memory_space<vmem>>, vector<1x128xf32>
    tpu.vector_store %arg14[%c5_150, %c0_151], %275 {strides = array<i32>} : memref<16x128xf32, #tpu.memory_space<vmem>>, vector<1x128xf32>,
    %277 = vector.extract_strided_slice %264 {offsets = [3, 0], sizes = [1, 128], strides = [1, 1]} : vector<8x256xf32> to vector<1x128xf32>
    %c6_152 = arith.constant 6 : index
    %c0_153 = arith.constant 0 : index
    %278 = vector.load %arg14[%c6_152, %c0_153] : memref<16x128xf32, #tpu.memory_space<vmem>>, vector<1x128xf32>
    tpu.vector_store %arg14[%c6_152, %c0_153], %277 {strides = array<i32>} : memref<16x128xf32, #tpu.memory_space<vmem>>, vector<1x128xf32>,
    %279 = vector.extract_strided_slice %264 {offsets = [4, 128], sizes = [1, 128], strides = [1, 1]} : vector<8x256xf32> to vector<1x128xf32>
    %c7_154 = arith.constant 7 : index
    %c0_155 = arith.constant 0 : index
    %280 = vector.load %arg14[%c7_154, %c0_155] : memref<16x128xf32, #tpu.memory_space<vmem>>, vector<1x128xf32>
    tpu.vector_store %arg14[%c7_154, %c0_155], %279 {strides = array<i32>} : memref<16x128xf32, #tpu.memory_space<vmem>>, vector<1x128xf32>,
    %281 = vector.extract_strided_slice %264 {offsets = [4, 0], sizes = [1, 128], strides = [1, 1]} : vector<8x256xf32> to vector<1x128xf32>
    %c8_156 = arith.constant 8 : index
    %c0_157 = arith.constant 0 : index
    %282 = vector.load %arg14[%c8_156, %c0_157] : memref<16x128xf32, #tpu.memory_space<vmem>>, vector<1x128xf32>
    tpu.vector_store %arg14[%c8_156, %c0_157], %281 {strides = array<i32>} : memref<16x128xf32, #tpu.memory_space<vmem>>, vector<1x128xf32>,
    %283 = vector.extract_strided_slice %264 {offsets = [3, 128], sizes = [1, 128], strides = [1, 1]} : vector<8x256xf32> to vector<1x128xf32>
    %c9 = arith.constant 9 : index
    %c0_158 = arith.constant 0 : index
    %284 = vector.load %arg14[%c9, %c0_158] : memref<16x128xf32, #tpu.memory_space<vmem>>, vector<1x128xf32>
    tpu.vector_store %arg14[%c9, %c0_158], %283 {strides = array<i32>} : memref<16x128xf32, #tpu.memory_space<vmem>>, vector<1x128xf32>,
    %285 = vector.extract_strided_slice %264 {offsets = [5, 0], sizes = [1, 128], strides = [1, 1]} : vector<8x256xf32> to vector<1x128xf32>
    %c10 = arith.constant 10 : index
    %c0_159 = arith.constant 0 : index
    %286 = vector.load %arg14[%c10, %c0_159] : memref<16x128xf32, #tpu.memory_space<vmem>>, vector<1x128xf32>
    tpu.vector_store %arg14[%c10, %c0_159], %285 {strides = array<i32>} : memref<16x128xf32, #tpu.memory_space<vmem>>, vector<1x128xf32>,
    %287 = vector.extract_strided_slice %264 {offsets = [2, 128], sizes = [1, 128], strides = [1, 1]} : vector<8x256xf32> to vector<1x128xf32>
    %c11 = arith.constant 11 : index
    %c0_160 = arith.constant 0 : index
    %288 = vector.load %arg14[%c11, %c0_160] : memref<16x128xf32, #tpu.memory_space<vmem>>, vector<1x128xf32>
    tpu.vector_store %arg14[%c11, %c0_160], %287 {strides = array<i32>} : memref<16x128xf32, #tpu.memory_space<vmem>>, vector<1x128xf32>,
    %289 = vector.extract_strided_slice %264 {offsets = [6, 0], sizes = [1, 128], strides = [1, 1]} : vector<8x256xf32> to vector<1x128xf32>
    %c12 = arith.constant 12 : index
    %c0_161 = arith.constant 0 : index
    %290 = vector.load %arg14[%c12, %c0_161] : memref<16x128xf32, #tpu.memory_space<vmem>>, vector<1x128xf32>
    tpu.vector_store %arg14[%c12, %c0_161], %289 {strides = array<i32>} : memref<16x128xf32, #tpu.memory_space<vmem>>, vector<1x128xf32>,
    %291 = vector.extract_strided_slice %264 {offsets = [1, 128], sizes = [1, 128], strides = [1, 1]} : vector<8x256xf32> to vector<1x128xf32>
    %c13 = arith.constant 13 : index
    %c0_162 = arith.constant 0 : index
    %292 = vector.load %arg14[%c13, %c0_162] : memref<16x128xf32, #tpu.memory_space<vmem>>, vector<1x128xf32>
    tpu.vector_store %arg14[%c13, %c0_162], %291 {strides = array<i32>} : memref<16x128xf32, #tpu.memory_space<vmem>>, vector<1x128xf32>,
    %293 = vector.extract_strided_slice %264 {offsets = [7, 0], sizes = [1, 128], strides = [1, 1]} : vector<8x256xf32> to vector<1x128xf32>
    %c14 = arith.constant 14 : index
    %c0_163 = arith.constant 0 : index
    %294 = vector.load %arg14[%c14, %c0_163] : memref<16x128xf32, #tpu.memory_space<vmem>>, vector<1x128xf32>
    tpu.vector_store %arg14[%c14, %c0_163], %293 {strides = array<i32>} : memref<16x128xf32, #tpu.memory_space<vmem>>, vector<1x128xf32>,
    %295 = vector.extract_strided_slice %264 {offsets = [0, 128], sizes = [1, 128], strides = [1, 1]} : vector<8x256xf32> to vector<1x128xf32>
    %c15 = arith.constant 15 : index
    %c0_164 = arith.constant 0 : index
    %296 = vector.load %arg14[%c15, %c0_164] : memref<16x128xf32, #tpu.memory_space<vmem>>, vector<1x128xf32>
    tpu.vector_store %arg14[%c15, %c0_164], %295 {strides = array<i32>} : memref<16x128xf32, #tpu.memory_space<vmem>>, vector<1x128xf32>,
    %c32 = arith.constant 32 : index
    %c0_165 = arith.constant 0 : index
    %297 = vector.load %arg5[%c32, %c0_165] : memref<65x256xbf16, #tpu.memory_space<vmem>>, vector<32x256xbf16>
    %298 = tpu.iota {dimensions = array<i32: 0>} : vector<2x128xi32>
    %c0_i32 = arith.constant 0 : i32
    %299 = vector.broadcast %c0_i32 : i32 to vector<2x128xi32>
    %300 = arith.cmpi eq, %298, %299 : vector<2x128xi32>
    %cst_166 = arith.constant 0.000000e+00 : f32
    %301 = vector.broadcast %cst_166 : f32 to vector<2x32xf32>
    %cst_167 = arith.constant 0.000000e+00 : f32
    %302 = vector.broadcast %cst_167 : f32 to vector<2x32xf32>
    %303 = arith.truncf %301 : vector<2x32xf32> to vector<2x32xbf16>
    %cst_168 = arith.constant dense<0.000000e+00> : vector<2x256xf32>
    %304 = tpu.matmul %303, %297, %cst_168 {dimension_numbers = #tpu.dot_dimension_numbers<[1], [0], [0], [1], [0, 0, 1, 1], [], []>} : vector<2x32xbf16>, vector<32x256xbf16>, vector<2x256xf32> -> vector<2x256xf32>
    %305 = vector.extract_strided_slice %304 {offsets = [0, 0], sizes = [2, 128], strides = [1, 1]} : vector<2x256xf32> to vector<2x128xf32>
    %306 = vector.extract_strided_slice %304 {offsets = [0, 128], sizes = [2, 128], strides = [1, 1]} : vector<2x256xf32> to vector<2x128xf32>
    %307 = arith.select %300, %305, %306 : vector<2x128xi1>, vector<2x128xf32>
    %c0_169 = arith.constant 0 : index
    %c0_170 = arith.constant 0 : index
    %308 = vector.load %arg14[%c0_169, %c0_170] : memref<16x128xf32, #tpu.memory_space<vmem>>, vector<2x128xf32>
    %309 = arith.addf %307, %308 : vector<2x128xf32>
    %310 = arith.negf %309 : vector<2x128xf32>
    %311 = math.exp %310 : vector<2x128xf32>
    %cst_171 = arith.constant 1.000000e+00 : f32
    %312 = vector.broadcast %cst_171 : f32 to vector<2x128xf32>
    %313 = arith.addf %312, %311 : vector<2x128xf32>
    %314 = arith.divf %312, %313 : vector<2x128xf32>
    %315 = vector.extract_strided_slice %309 {offsets = [0, 64], sizes = [2, 32], strides = [1, 1]} : vector<2x128xf32> to vector<2x32xf32>
    %316 = math.tanh %315 : vector<2x32xf32>
    %317 = vector.extract_strided_slice %314 {offsets = [0, 32], sizes = [2, 32], strides = [1, 1]} : vector<2x128xf32> to vector<2x32xf32>
    %318 = arith.mulf %317, %302 : vector<2x32xf32>
    %319 = vector.extract_strided_slice %314 {offsets = [0, 0], sizes = [2, 32], strides = [1, 1]} : vector<2x128xf32> to vector<2x32xf32>
    %320 = arith.mulf %319, %316 : vector<2x32xf32>
    %321 = arith.addf %318, %320 : vector<2x32xf32>
    %322 = vector.extract_strided_slice %314 {offsets = [0, 96], sizes = [2, 32], strides = [1, 1]} : vector<2x128xf32> to vector<2x32xf32>
    %323 = math.tanh %321 : vector<2x32xf32>
    %324 = arith.mulf %322, %323 : vector<2x32xf32>
    %325 = vector.extract_strided_slice %324 {offsets = [0, 0], sizes = [1, 32], strides = [1, 1]} : vector<2x32xf32> to vector<1x32xf32>
    %c0_172 = arith.constant 0 : index
    %c0_173 = arith.constant 0 : index
    %326 = vector.load %arg12[%c0_172, %c0_173] : memref<8x32xf32, #tpu.memory_space<vmem>>, vector<1x32xf32>
    tpu.vector_store %arg12[%c0_172, %c0_173], %325 {strides = array<i32>} : memref<8x32xf32, #tpu.memory_space<vmem>>, vector<1x32xf32>,
    %327 = vector.extract_strided_slice %324 {offsets = [1, 0], sizes = [1, 32], strides = [1, 1]} : vector<2x32xf32> to vector<1x32xf32>
    %c7_174 = arith.constant 7 : index
    %c0_175 = arith.constant 0 : index
    %328 = vector.load %arg13[%c7_174, %c0_175] : memref<8x32xf32, #tpu.memory_space<vmem>>, vector<1x32xf32>
    tpu.vector_store %arg13[%c7_174, %c0_175], %327 {strides = array<i32>} : memref<8x32xf32, #tpu.memory_space<vmem>>, vector<1x32xf32>,
    %329 = arith.truncf %324 : vector<2x32xf32> to vector<2x32xbf16>
    %cst_176 = arith.constant dense<0.000000e+00> : vector<2x256xf32>
    %330 = tpu.matmul %329, %297, %cst_176 {dimension_numbers = #tpu.dot_dimension_numbers<[1], [0], [0], [1], [0, 0, 1, 1], [], []>} : vector<2x32xbf16>, vector<32x256xbf16>, vector<2x256xf32> -> vector<2x256xf32>
    %331 = vector.extract_strided_slice %330 {offsets = [0, 0], sizes = [2, 128], strides = [1, 1]} : vector<2x256xf32> to vector<2x128xf32>
    %332 = vector.extract_strided_slice %330 {offsets = [0, 128], sizes = [2, 128], strides = [1, 1]} : vector<2x256xf32> to vector<2x128xf32>
    %333 = arith.select %300, %331, %332 : vector<2x128xi1>, vector<2x128xf32>
    %c2_177 = arith.constant 2 : index
    %c0_178 = arith.constant 0 : index
    %334 = vector.load %arg14[%c2_177, %c0_178] : memref<16x128xf32, #tpu.memory_space<vmem>>, vector<2x128xf32>
    %335 = arith.addf %333, %334 : vector<2x128xf32>
    %336 = arith.negf %335 : vector<2x128xf32>
    %337 = math.exp %336 : vector<2x128xf32>
    %cst_179 = arith.constant 1.000000e+00 : f32
    %338 = vector.broadcast %cst_179 : f32 to vector<2x128xf32>
    %339 = arith.addf %338, %337 : vector<2x128xf32>
    %340 = arith.divf %338, %339 : vector<2x128xf32>
    %341 = vector.extract_strided_slice %335 {offsets = [0, 64], sizes = [2, 32], strides = [1, 1]} : vector<2x128xf32> to vector<2x32xf32>
    %342 = math.tanh %341 : vector<2x32xf32>
    %343 = vector.extract_strided_slice %340 {offsets = [0, 32], sizes = [2, 32], strides = [1, 1]} : vector<2x128xf32> to vector<2x32xf32>
    %344 = arith.mulf %343, %321 : vector<2x32xf32>
    %345 = vector.extract_strided_slice %340 {offsets = [0, 0], sizes = [2, 32], strides = [1, 1]} : vector<2x128xf32> to vector<2x32xf32>
    %346 = arith.mulf %345, %342 : vector<2x32xf32>
    %347 = arith.addf %344, %346 : vector<2x32xf32>
    %348 = vector.extract_strided_slice %340 {offsets = [0, 96], sizes = [2, 32], strides = [1, 1]} : vector<2x128xf32> to vector<2x32xf32>
    %349 = math.tanh %347 : vector<2x32xf32>
    %350 = arith.mulf %348, %349 : vector<2x32xf32>
    %351 = vector.extract_strided_slice %350 {offsets = [0, 0], sizes = [1, 32], strides = [1, 1]} : vector<2x32xf32> to vector<1x32xf32>
    %c1_180 = arith.constant 1 : index
    %c0_181 = arith.constant 0 : index
    %352 = vector.load %arg12[%c1_180, %c0_181] : memref<8x32xf32, #tpu.memory_space<vmem>>, vector<1x32xf32>
    tpu.vector_store %arg12[%c1_180, %c0_181], %351 {strides = array<i32>} : memref<8x32xf32, #tpu.memory_space<vmem>>, vector<1x32xf32>,
    %353 = vector.extract_strided_slice %350 {offsets = [1, 0], sizes = [1, 32], strides = [1, 1]} : vector<2x32xf32> to vector<1x32xf32>
    %c6_182 = arith.constant 6 : index
    %c0_183 = arith.constant 0 : index
    %354 = vector.load %arg13[%c6_182, %c0_183] : memref<8x32xf32, #tpu.memory_space<vmem>>, vector<1x32xf32>
    tpu.vector_store %arg13[%c6_182, %c0_183], %353 {strides = array<i32>} : memref<8x32xf32, #tpu.memory_space<vmem>>, vector<1x32xf32>,
    %355 = arith.truncf %350 : vector<2x32xf32> to vector<2x32xbf16>
    %cst_184 = arith.constant dense<0.000000e+00> : vector<2x256xf32>
    %356 = tpu.matmul %355, %297, %cst_184 {dimension_numbers = #tpu.dot_dimension_numbers<[1], [0], [0], [1], [0, 0, 1, 1], [], []>} : vector<2x32xbf16>, vector<32x256xbf16>, vector<2x256xf32> -> vector<2x256xf32>
    %357 = vector.extract_strided_slice %356 {offsets = [0, 0], sizes = [2, 128], strides = [1, 1]} : vector<2x256xf32> to vector<2x128xf32>
    %358 = vector.extract_strided_slice %356 {offsets = [0, 128], sizes = [2, 128], strides = [1, 1]} : vector<2x256xf32> to vector<2x128xf32>
    %359 = arith.select %300, %357, %358 : vector<2x128xi1>, vector<2x128xf32>
    %c4_185 = arith.constant 4 : index
    %c0_186 = arith.constant 0 : index
    %360 = vector.load %arg14[%c4_185, %c0_186] : memref<16x128xf32, #tpu.memory_space<vmem>>, vector<2x128xf32>
    %361 = arith.addf %359, %360 : vector<2x128xf32>
    %362 = arith.negf %361 : vector<2x128xf32>
    %363 = math.exp %362 : vector<2x128xf32>
    %cst_187 = arith.constant 1.000000e+00 : f32
    %364 = vector.broadcast %cst_187 : f32 to vector<2x128xf32>
    %365 = arith.addf %364, %363 : vector<2x128xf32>
    %366 = arith.divf %364, %365 : vector<2x128xf32>
    %367 = vector.extract_strided_slice %361 {offsets = [0, 64], sizes = [2, 32], strides = [1, 1]} : vector<2x128xf32> to vector<2x32xf32>
    %368 = math.tanh %367 : vector<2x32xf32>
    %369 = vector.extract_strided_slice %366 {offsets = [0, 32], sizes = [2, 32], strides = [1, 1]} : vector<2x128xf32> to vector<2x32xf32>
    %370 = arith.mulf %369, %347 : vector<2x32xf32>
    %371 = vector.extract_strided_slice %366 {offsets = [0, 0], sizes = [2, 32], strides = [1, 1]} : vector<2x128xf32> to vector<2x32xf32>
    %372 = arith.mulf %371, %368 : vector<2x32xf32>
    %373 = arith.addf %370, %372 : vector<2x32xf32>
    %374 = vector.extract_strided_slice %366 {offsets = [0, 96], sizes = [2, 32], strides = [1, 1]} : vector<2x128xf32> to vector<2x32xf32>
    %375 = math.tanh %373 : vector<2x32xf32>
    %376 = arith.mulf %374, %375 : vector<2x32xf32>
    %377 = vector.extract_strided_slice %376 {offsets = [0, 0], sizes = [1, 32], strides = [1, 1]} : vector<2x32xf32> to vector<1x32xf32>
    %c2_188 = arith.constant 2 : index
    %c0_189 = arith.constant 0 : index
    %378 = vector.load %arg12[%c2_188, %c0_189] : memref<8x32xf32, #tpu.memory_space<vmem>>, vector<1x32xf32>
    tpu.vector_store %arg12[%c2_188, %c0_189], %377 {strides = array<i32>} : memref<8x32xf32, #tpu.memory_space<vmem>>, vector<1x32xf32>,
    %379 = vector.extract_strided_slice %376 {offsets = [1, 0], sizes = [1, 32], strides = [1, 1]} : vector<2x32xf32> to vector<1x32xf32>
    %c5_190 = arith.constant 5 : index
    %c0_191 = arith.constant 0 : index
    %380 = vector.load %arg13[%c5_190, %c0_191] : memref<8x32xf32, #tpu.memory_space<vmem>>, vector<1x32xf32>
    tpu.vector_store %arg13[%c5_190, %c0_191], %379 {strides = array<i32>} : memref<8x32xf32, #tpu.memory_space<vmem>>, vector<1x32xf32>,
    %381 = arith.truncf %376 : vector<2x32xf32> to vector<2x32xbf16>
    %cst_192 = arith.constant dense<0.000000e+00> : vector<2x256xf32>
    %382 = tpu.matmul %381, %297, %cst_192 {dimension_numbers = #tpu.dot_dimension_numbers<[1], [0], [0], [1], [0, 0, 1, 1], [], []>} : vector<2x32xbf16>, vector<32x256xbf16>, vector<2x256xf32> -> vector<2x256xf32>
    %383 = vector.extract_strided_slice %382 {offsets = [0, 0], sizes = [2, 128], strides = [1, 1]} : vector<2x256xf32> to vector<2x128xf32>
    %384 = vector.extract_strided_slice %382 {offsets = [0, 128], sizes = [2, 128], strides = [1, 1]} : vector<2x256xf32> to vector<2x128xf32>
    %385 = arith.select %300, %383, %384 : vector<2x128xi1>, vector<2x128xf32>
    %c6_193 = arith.constant 6 : index
    %c0_194 = arith.constant 0 : index
    %386 = vector.load %arg14[%c6_193, %c0_194] : memref<16x128xf32, #tpu.memory_space<vmem>>, vector<2x128xf32>
    %387 = arith.addf %385, %386 : vector<2x128xf32>
    %388 = arith.negf %387 : vector<2x128xf32>
    %389 = math.exp %388 : vector<2x128xf32>
    %cst_195 = arith.constant 1.000000e+00 : f32
    %390 = vector.broadcast %cst_195 : f32 to vector<2x128xf32>
    %391 = arith.addf %390, %389 : vector<2x128xf32>
    %392 = arith.divf %390, %391 : vector<2x128xf32>
    %393 = vector.extract_strided_slice %387 {offsets = [0, 64], sizes = [2, 32], strides = [1, 1]} : vector<2x128xf32> to vector<2x32xf32>
    %394 = math.tanh %393 : vector<2x32xf32>
    %395 = vector.extract_strided_slice %392 {offsets = [0, 32], sizes = [2, 32], strides = [1, 1]} : vector<2x128xf32> to vector<2x32xf32>
    %396 = arith.mulf %395, %373 : vector<2x32xf32>
    %397 = vector.extract_strided_slice %392 {offsets = [0, 0], sizes = [2, 32], strides = [1, 1]} : vector<2x128xf32> to vector<2x32xf32>
    %398 = arith.mulf %397, %394 : vector<2x32xf32>
    %399 = arith.addf %396, %398 : vector<2x32xf32>
    %400 = vector.extract_strided_slice %392 {offsets = [0, 96], sizes = [2, 32], strides = [1, 1]} : vector<2x128xf32> to vector<2x32xf32>
    %401 = math.tanh %399 : vector<2x32xf32>
    %402 = arith.mulf %400, %401 : vector<2x32xf32>
    %403 = vector.extract_strided_slice %402 {offsets = [0, 0], sizes = [1, 32], strides = [1, 1]} : vector<2x32xf32> to vector<1x32xf32>
    %c3_196 = arith.constant 3 : index
    %c0_197 = arith.constant 0 : index
    %404 = vector.load %arg12[%c3_196, %c0_197] : memref<8x32xf32, #tpu.memory_space<vmem>>, vector<1x32xf32>
    tpu.vector_store %arg12[%c3_196, %c0_197], %403 {strides = array<i32>} : memref<8x32xf32, #tpu.memory_space<vmem>>, vector<1x32xf32>,
    %405 = vector.extract_strided_slice %402 {offsets = [1, 0], sizes = [1, 32], strides = [1, 1]} : vector<2x32xf32> to vector<1x32xf32>
    %c4_198 = arith.constant 4 : index
    %c0_199 = arith.constant 0 : index
    %406 = vector.load %arg13[%c4_198, %c0_199] : memref<8x32xf32, #tpu.memory_space<vmem>>, vector<1x32xf32>
    tpu.vector_store %arg13[%c4_198, %c0_199], %405 {strides = array<i32>} : memref<8x32xf32, #tpu.memory_space<vmem>>, vector<1x32xf32>,
    %407 = arith.truncf %402 : vector<2x32xf32> to vector<2x32xbf16>
    %cst_200 = arith.constant dense<0.000000e+00> : vector<2x256xf32>
    %408 = tpu.matmul %407, %297, %cst_200 {dimension_numbers = #tpu.dot_dimension_numbers<[1], [0], [0], [1], [0, 0, 1, 1], [], []>} : vector<2x32xbf16>, vector<32x256xbf16>, vector<2x256xf32> -> vector<2x256xf32>
    %409 = vector.extract_strided_slice %408 {offsets = [0, 0], sizes = [2, 128], strides = [1, 1]} : vector<2x256xf32> to vector<2x128xf32>
    %410 = vector.extract_strided_slice %408 {offsets = [0, 128], sizes = [2, 128], strides = [1, 1]} : vector<2x256xf32> to vector<2x128xf32>
    %411 = arith.select %300, %409, %410 : vector<2x128xi1>, vector<2x128xf32>
    %c8_201 = arith.constant 8 : index
    %c0_202 = arith.constant 0 : index
    %412 = vector.load %arg14[%c8_201, %c0_202] : memref<16x128xf32, #tpu.memory_space<vmem>>, vector<2x128xf32>
    %413 = arith.addf %411, %412 : vector<2x128xf32>
    %414 = arith.negf %413 : vector<2x128xf32>
    %415 = math.exp %414 : vector<2x128xf32>
    %cst_203 = arith.constant 1.000000e+00 : f32
    %416 = vector.broadcast %cst_203 : f32 to vector<2x128xf32>
    %417 = arith.addf %416, %415 : vector<2x128xf32>
    %418 = arith.divf %416, %417 : vector<2x128xf32>
    %419 = vector.extract_strided_slice %413 {offsets = [0, 64], sizes = [2, 32], strides = [1, 1]} : vector<2x128xf32> to vector<2x32xf32>
    %420 = math.tanh %419 : vector<2x32xf32>
    %421 = vector.extract_strided_slice %418 {offsets = [0, 32], sizes = [2, 32], strides = [1, 1]} : vector<2x128xf32> to vector<2x32xf32>
    %422 = arith.mulf %421, %399 : vector<2x32xf32>
    %423 = vector.extract_strided_slice %418 {offsets = [0, 0], sizes = [2, 32], strides = [1, 1]} : vector<2x128xf32> to vector<2x32xf32>
    %424 = arith.mulf %423, %420 : vector<2x32xf32>
    %425 = arith.addf %422, %424 : vector<2x32xf32>
    %426 = vector.extract_strided_slice %418 {offsets = [0, 96], sizes = [2, 32], strides = [1, 1]} : vector<2x128xf32> to vector<2x32xf32>
    %427 = math.tanh %425 : vector<2x32xf32>
    %428 = arith.mulf %426, %427 : vector<2x32xf32>
    %429 = vector.extract_strided_slice %428 {offsets = [0, 0], sizes = [1, 32], strides = [1, 1]} : vector<2x32xf32> to vector<1x32xf32>
    %c4_204 = arith.constant 4 : index
    %c0_205 = arith.constant 0 : index
    %430 = vector.load %arg12[%c4_204, %c0_205] : memref<8x32xf32, #tpu.memory_space<vmem>>, vector<1x32xf32>
    tpu.vector_store %arg12[%c4_204, %c0_205], %429 {strides = array<i32>} : memref<8x32xf32, #tpu.memory_space<vmem>>, vector<1x32xf32>,
    %431 = vector.extract_strided_slice %428 {offsets = [1, 0], sizes = [1, 32], strides = [1, 1]} : vector<2x32xf32> to vector<1x32xf32>
    %c3_206 = arith.constant 3 : index
    %c0_207 = arith.constant 0 : index
    %432 = vector.load %arg13[%c3_206, %c0_207] : memref<8x32xf32, #tpu.memory_space<vmem>>, vector<1x32xf32>
    tpu.vector_store %arg13[%c3_206, %c0_207], %431 {strides = array<i32>} : memref<8x32xf32, #tpu.memory_space<vmem>>, vector<1x32xf32>,
    %433 = arith.truncf %428 : vector<2x32xf32> to vector<2x32xbf16>
    %cst_208 = arith.constant dense<0.000000e+00> : vector<2x256xf32>
    %434 = tpu.matmul %433, %297, %cst_208 {dimension_numbers = #tpu.dot_dimension_numbers<[1], [0], [0], [1], [0, 0, 1, 1], [], []>} : vector<2x32xbf16>, vector<32x256xbf16>, vector<2x256xf32> -> vector<2x256xf32>
    %435 = vector.extract_strided_slice %434 {offsets = [0, 0], sizes = [2, 128], strides = [1, 1]} : vector<2x256xf32> to vector<2x128xf32>
    %436 = vector.extract_strided_slice %434 {offsets = [0, 128], sizes = [2, 128], strides = [1, 1]} : vector<2x256xf32> to vector<2x128xf32>
    %437 = arith.select %300, %435, %436 : vector<2x128xi1>, vector<2x128xf32>
    %c10_209 = arith.constant 10 : index
    %c0_210 = arith.constant 0 : index
    %438 = vector.load %arg14[%c10_209, %c0_210] : memref<16x128xf32, #tpu.memory_space<vmem>>, vector<2x128xf32>
    %439 = arith.addf %437, %438 : vector<2x128xf32>
    %440 = arith.negf %439 : vector<2x128xf32>
    %441 = math.exp %440 : vector<2x128xf32>
    %cst_211 = arith.constant 1.000000e+00 : f32
    %442 = vector.broadcast %cst_211 : f32 to vector<2x128xf32>
    %443 = arith.addf %442, %441 : vector<2x128xf32>
    %444 = arith.divf %442, %443 : vector<2x128xf32>
    %445 = vector.extract_strided_slice %439 {offsets = [0, 64], sizes = [2, 32], strides = [1, 1]} : vector<2x128xf32> to vector<2x32xf32>
    %446 = math.tanh %445 : vector<2x32xf32>
    %447 = vector.extract_strided_slice %444 {offsets = [0, 32], sizes = [2, 32], strides = [1, 1]} : vector<2x128xf32> to vector<2x32xf32>
    %448 = arith.mulf %447, %425 : vector<2x32xf32>
    %449 = vector.extract_strided_slice %444 {offsets = [0, 0], sizes = [2, 32], strides = [1, 1]} : vector<2x128xf32> to vector<2x32xf32>
    %450 = arith.mulf %449, %446 : vector<2x32xf32>
    %451 = arith.addf %448, %450 : vector<2x32xf32>
    %452 = vector.extract_strided_slice %444 {offsets = [0, 96], sizes = [2, 32], strides = [1, 1]} : vector<2x128xf32> to vector<2x32xf32>
    %453 = math.tanh %451 : vector<2x32xf32>
    %454 = arith.mulf %452, %453 : vector<2x32xf32>
    %455 = vector.extract_strided_slice %454 {offsets = [0, 0], sizes = [1, 32], strides = [1, 1]} : vector<2x32xf32> to vector<1x32xf32>
    %c5_212 = arith.constant 5 : index
    %c0_213 = arith.constant 0 : index
    %456 = vector.load %arg12[%c5_212, %c0_213] : memref<8x32xf32, #tpu.memory_space<vmem>>, vector<1x32xf32>
    tpu.vector_store %arg12[%c5_212, %c0_213], %455 {strides = array<i32>} : memref<8x32xf32, #tpu.memory_space<vmem>>, vector<1x32xf32>,
    %457 = vector.extract_strided_slice %454 {offsets = [1, 0], sizes = [1, 32], strides = [1, 1]} : vector<2x32xf32> to vector<1x32xf32>
    %c2_214 = arith.constant 2 : index
    %c0_215 = arith.constant 0 : index
    %458 = vector.load %arg13[%c2_214, %c0_215] : memref<8x32xf32, #tpu.memory_space<vmem>>, vector<1x32xf32>
    tpu.vector_store %arg13[%c2_214, %c0_215], %457 {strides = array<i32>} : memref<8x32xf32, #tpu.memory_space<vmem>>, vector<1x32xf32>,
    %459 = arith.truncf %454 : vector<2x32xf32> to vector<2x32xbf16>
    %cst_216 = arith.constant dense<0.000000e+00> : vector<2x256xf32>
    %460 = tpu.matmul %459, %297, %cst_216 {dimension_numbers = #tpu.dot_dimension_numbers<[1], [0], [0], [1], [0, 0, 1, 1], [], []>} : vector<2x32xbf16>, vector<32x256xbf16>, vector<2x256xf32> -> vector<2x256xf32>
    %461 = vector.extract_strided_slice %460 {offsets = [0, 0], sizes = [2, 128], strides = [1, 1]} : vector<2x256xf32> to vector<2x128xf32>
    %462 = vector.extract_strided_slice %460 {offsets = [0, 128], sizes = [2, 128], strides = [1, 1]} : vector<2x256xf32> to vector<2x128xf32>
    %463 = arith.select %300, %461, %462 : vector<2x128xi1>, vector<2x128xf32>
    %c12_217 = arith.constant 12 : index
    %c0_218 = arith.constant 0 : index
    %464 = vector.load %arg14[%c12_217, %c0_218] : memref<16x128xf32, #tpu.memory_space<vmem>>, vector<2x128xf32>
    %465 = arith.addf %463, %464 : vector<2x128xf32>
    %466 = arith.negf %465 : vector<2x128xf32>
    %467 = math.exp %466 : vector<2x128xf32>
    %cst_219 = arith.constant 1.000000e+00 : f32
    %468 = vector.broadcast %cst_219 : f32 to vector<2x128xf32>
    %469 = arith.addf %468, %467 : vector<2x128xf32>
    %470 = arith.divf %468, %469 : vector<2x128xf32>
    %471 = vector.extract_strided_slice %465 {offsets = [0, 64], sizes = [2, 32], strides = [1, 1]} : vector<2x128xf32> to vector<2x32xf32>
    %472 = math.tanh %471 : vector<2x32xf32>
    %473 = vector.extract_strided_slice %470 {offsets = [0, 32], sizes = [2, 32], strides = [1, 1]} : vector<2x128xf32> to vector<2x32xf32>
    %474 = arith.mulf %473, %451 : vector<2x32xf32>
    %475 = vector.extract_strided_slice %470 {offsets = [0, 0], sizes = [2, 32], strides = [1, 1]} : vector<2x128xf32> to vector<2x32xf32>
    %476 = arith.mulf %475, %472 : vector<2x32xf32>
    %477 = arith.addf %474, %476 : vector<2x32xf32>
    %478 = vector.extract_strided_slice %470 {offsets = [0, 96], sizes = [2, 32], strides = [1, 1]} : vector<2x128xf32> to vector<2x32xf32>
    %479 = math.tanh %477 : vector<2x32xf32>
    %480 = arith.mulf %478, %479 : vector<2x32xf32>
    %481 = vector.extract_strided_slice %480 {offsets = [0, 0], sizes = [1, 32], strides = [1, 1]} : vector<2x32xf32> to vector<1x32xf32>
    %c6_220 = arith.constant 6 : index
    %c0_221 = arith.constant 0 : index
    %482 = vector.load %arg12[%c6_220, %c0_221] : memref<8x32xf32, #tpu.memory_space<vmem>>, vector<1x32xf32>
    tpu.vector_store %arg12[%c6_220, %c0_221], %481 {strides = array<i32>} : memref<8x32xf32, #tpu.memory_space<vmem>>, vector<1x32xf32>,
    %483 = vector.extract_strided_slice %480 {offsets = [1, 0], sizes = [1, 32], strides = [1, 1]} : vector<2x32xf32> to vector<1x32xf32>
    %c1_222 = arith.constant 1 : index
    %c0_223 = arith.constant 0 : index
    %484 = vector.load %arg13[%c1_222, %c0_223] : memref<8x32xf32, #tpu.memory_space<vmem>>, vector<1x32xf32>
    tpu.vector_store %arg13[%c1_222, %c0_223], %483 {strides = array<i32>} : memref<8x32xf32, #tpu.memory_space<vmem>>, vector<1x32xf32>,
    %485 = arith.truncf %480 : vector<2x32xf32> to vector<2x32xbf16>
    %cst_224 = arith.constant dense<0.000000e+00> : vector<2x256xf32>
    %486 = tpu.matmul %485, %297, %cst_224 {dimension_numbers = #tpu.dot_dimension_numbers<[1], [0], [0], [1], [0, 0, 1, 1], [], []>} : vector<2x32xbf16>, vector<32x256xbf16>, vector<2x256xf32> -> vector<2x256xf32>
    %487 = vector.extract_strided_slice %486 {offsets = [0, 0], sizes = [2, 128], strides = [1, 1]} : vector<2x256xf32> to vector<2x128xf32>
    %488 = vector.extract_strided_slice %486 {offsets = [0, 128], sizes = [2, 128], strides = [1, 1]} : vector<2x256xf32> to vector<2x128xf32>
    %489 = arith.select %300, %487, %488 : vector<2x128xi1>, vector<2x128xf32>
    %c14_225 = arith.constant 14 : index
    %c0_226 = arith.constant 0 : index
    %490 = vector.load %arg14[%c14_225, %c0_226] : memref<16x128xf32, #tpu.memory_space<vmem>>, vector<2x128xf32>
    %491 = arith.addf %489, %490 : vector<2x128xf32>
    %492 = arith.negf %491 : vector<2x128xf32>
    %493 = math.exp %492 : vector<2x128xf32>
    %cst_227 = arith.constant 1.000000e+00 : f32
    %494 = vector.broadcast %cst_227 : f32 to vector<2x128xf32>
    %495 = arith.addf %494, %493 : vector<2x128xf32>
    %496 = arith.divf %494, %495 : vector<2x128xf32>
    %497 = vector.extract_strided_slice %491 {offsets = [0, 64], sizes = [2, 32], strides = [1, 1]} : vector<2x128xf32> to vector<2x32xf32>
    %498 = math.tanh %497 : vector<2x32xf32>
    %499 = vector.extract_strided_slice %496 {offsets = [0, 32], sizes = [2, 32], strides = [1, 1]} : vector<2x128xf32> to vector<2x32xf32>
    %500 = arith.mulf %499, %477 : vector<2x32xf32>
    %501 = vector.extract_strided_slice %496 {offsets = [0, 0], sizes = [2, 32], strides = [1, 1]} : vector<2x128xf32> to vector<2x32xf32>
    %502 = arith.mulf %501, %498 : vector<2x32xf32>
    %503 = arith.addf %500, %502 : vector<2x32xf32>
    %504 = vector.extract_strided_slice %496 {offsets = [0, 96], sizes = [2, 32], strides = [1, 1]} : vector<2x128xf32> to vector<2x32xf32>
    %505 = math.tanh %503 : vector<2x32xf32>
    %506 = arith.mulf %504, %505 : vector<2x32xf32>
    %507 = vector.extract_strided_slice %506 {offsets = [0, 0], sizes = [1, 32], strides = [1, 1]} : vector<2x32xf32> to vector<1x32xf32>
    %c7_228 = arith.constant 7 : index
    %c0_229 = arith.constant 0 : index
    %508 = vector.load %arg12[%c7_228, %c0_229] : memref<8x32xf32, #tpu.memory_space<vmem>>, vector<1x32xf32>
    tpu.vector_store %arg12[%c7_228, %c0_229], %507 {strides = array<i32>} : memref<8x32xf32, #tpu.memory_space<vmem>>, vector<1x32xf32>,
    %509 = vector.extract_strided_slice %506 {offsets = [1, 0], sizes = [1, 32], strides = [1, 1]} : vector<2x32xf32> to vector<1x32xf32>
    %c0_230 = arith.constant 0 : index
    %c0_231 = arith.constant 0 : index
    %510 = vector.load %arg13[%c0_230, %c0_231] : memref<8x32xf32, #tpu.memory_space<vmem>>, vector<1x32xf32>
    tpu.vector_store %arg13[%c0_230, %c0_231], %509 {strides = array<i32>} : memref<8x32xf32, #tpu.memory_space<vmem>>, vector<1x32xf32>,
    %c0_232 = arith.constant 0 : index
    %c0_233 = arith.constant 0 : index
    %511 = vector.load %arg12[%c0_232, %c0_233] : memref<8x32xf32, #tpu.memory_space<vmem>>, vector<8x32xf32>
    %512 = arith.truncf %511 : vector<8x32xf32> to vector<8x32xbf16>
    %c0_234 = arith.constant 0 : index
    %c0_235 = arith.constant 0 : index
    %513 = vector.load %arg6[%c0_234, %c0_235] : memref<65x128xbf16, #tpu.memory_space<vmem>>, vector<32x128xbf16>
    %cst_236 = arith.constant dense<0.000000e+00> : vector<8x128xf32>
    %514 = tpu.matmul %512, %513, %cst_236 {dimension_numbers = #tpu.dot_dimension_numbers<[1], [0], [0], [1], [0, 0, 1, 1], [], []>} : vector<8x32xbf16>, vector<32x128xbf16>, vector<8x128xf32> -> vector<8x128xf32>
    %c0_237 = arith.constant 0 : index
    %c0_238 = arith.constant 0 : index
    %515 = vector.load %arg13[%c0_237, %c0_238] : memref<8x32xf32, #tpu.memory_space<vmem>>, vector<8x32xf32>
    %516 = arith.truncf %515 : vector<8x32xf32> to vector<8x32xbf16>
    %c32_239 = arith.constant 32 : index
    %c0_240 = arith.constant 0 : index
    %517 = vector.load %arg6[%c32_239, %c0_240] : memref<65x128xbf16, #tpu.memory_space<vmem>>, vector<32x128xbf16>
    %cst_241 = arith.constant dense<0.000000e+00> : vector<8x128xf32>
    %518 = tpu.matmul %516, %517, %cst_241 {dimension_numbers = #tpu.dot_dimension_numbers<[1], [0], [0], [1], [0, 0, 1, 1], [], []>} : vector<8x32xbf16>, vector<32x128xbf16>, vector<8x128xf32> -> vector<8x128xf32>
    %519 = arith.addf %514, %518 : vector<8x128xf32>
    %c64_242 = arith.constant 64 : index
    %c0_243 = arith.constant 0 : index
    %520 = vector.load %arg6[%c64_242, %c0_243] : memref<65x128xbf16, #tpu.memory_space<vmem>>, vector<1x128xbf16>
    %521 = arith.extf %520 : vector<1x128xbf16> to vector<1x128xf32>
    %522 = vector.broadcast %521 : vector<1x128xf32> to vector<8x128xf32>
    %523 = arith.addf %519, %522 : vector<8x128xf32>
    %cst_244 = arith.constant dense<0xFF800000> : vector<8xf32>
    %524 = vector.multi_reduction <maximumf>, %523, %cst_244 [1] : vector<8x128xf32> to vector<8xf32>
    %525 = vector.shape_cast %524 : vector<8xf32> to vector<8x1xf32>
    %526 = vector.broadcast %525 : vector<8x1xf32> to vector<8x128xf32>
    %527 = arith.subf %523, %526 : vector<8x128xf32>
    %528 = math.exp %527 : vector<8x128xf32>
    %cst_245 = arith.constant dense<0.000000e+00> : vector<8xf32>
    %529 = vector.multi_reduction <add>, %528, %cst_245 [1] : vector<8x128xf32> to vector<8xf32>
    %530 = vector.shape_cast %529 : vector<8xf32> to vector<8x1xf32>
    %531 = math.log %530 : vector<8x1xf32>
    %532 = vector.broadcast %531 : vector<8x1xf32> to vector<8x128xf32>
    %533 = arith.subf %527, %532 : vector<8x128xf32>
    %c0_246 = arith.constant 0 : index
    %c0_247 = arith.constant 0 : index
    %534 = vector.load %arg7[%c0_246, %c0_247] : memref<8x128xf32, #tpu.memory_space<vmem>>, vector<8x128xf32>
    tpu.vector_store %arg7[%c0_246, %c0_247], %533 {strides = array<i32>} : memref<8x128xf32, #tpu.memory_space<vmem>>, vector<8x128xf32>,
    return
  }
}

</mosaic_0001>

<llo_original>
// kernel: customed_bilstm_forward.1
$region0: #{customed_bilstm_forward.1}
  #allocation0 [shape = 'u32[]', space=smem, size = 0x4, offset = 0x4, fixed_abs, tag = 'smem constant byte address 0x4 - core index']
  #allocation1 [shape = 'u32[72,128]{1,0:T(1,128)}', space=vmem, size = 0x9000, scoped, tag = 'internal scratch']
  #allocation2 [shape = 'f32[8,8]{1,0:T(8,128)}', space=vmem, size = 0x1000, scoped, tag = 'scratch operand']
  #allocation3 [shape = 'f32[8,16]{1,0:T(8,128)}', space=vmem, size = 0x1000, scoped, tag = 'scratch operand']
  #allocation4 [shape = 'f32[8,64]{1,0:T(8,128)}', space=vmem, size = 0x1000, scoped, tag = 'scratch operand']
  #allocation5 [shape = 'f32[8,16]{1,0:T(8,128)}', space=vmem, size = 0x1000, scoped, tag = 'scratch operand']
  #allocation6 [shape = 'f32[8,32]{1,0:T(8,128)}', space=vmem, size = 0x1000, scoped, tag = 'scratch operand']
  #allocation7 [shape = 'f32[8,32]{1,0:T(8,128)}', space=vmem, size = 0x1000, scoped, tag = 'scratch operand']
  #allocation8 [shape = 'f32[16,128]{1,0:T(8,128)}', space=vmem, size = 0x2000, scoped, tag = 'scratch operand']
  %s0 = inlined_call_operand.vmem [shape: s32[8], index: 0, kind: input, shape index: {}]
  %s1 = inlined_call_operand.vmem [shape: s32[8], index: 1, kind: input, shape index: {}]
  %s2 = inlined_call_operand.vmem [shape: f32[20,1,8], index: 2, kind: input, shape index: {}]
  %s3 = inlined_call_operand.vmem [shape: f32[30,1,16], index: 3, kind: input, shape index: {}]
  %s4 = inlined_call_operand.vmem [shape: bf16[25,64], index: 4, kind: input, shape index: {}]
  %s5 = inlined_call_operand.hbm [shape: bf16[65,256], index: 5, kind: input, shape index: {}]
  %s6 = inlined_call_operand.vmem [shape: bf16[65,128], index: 6, kind: input, shape index: {}]
  %s7 = inlined_call_operand.hbm [shape: f32[8,128], index: 7, kind: output, shape index: {}]
  %s8 = sld [smem:[#allocation0]]
  $region50: #{customed_bilstm_forward.1} parent=0
    _
  %s10 = ssub.s32 1, %s8
  %s11 = scalar_select 0, %s10, %s8
  $region1: #{customed_bilstm_forward.1} parent=0
    #allocation9 [shape = 'u8[512]{0}', space=smem, size = 0x200, scoped, tag = 'input window, operand 0, single buffered']
    #allocation10 [shape = 's32[1]{0}', space=sflag, size = 0x4, scoped, tag = 'scoped memory for customed_bilstm_forward.1']
    #allocation11 [shape = 's32[1]{0}', space=sflag, size = 0x4, scoped, tag = 'scoped memory for customed_bilstm_forward.1']
    #allocation12 [shape = 's32[1]{0}', space=sflag, size = 0x4, scoped, tag = 'scoped memory for customed_bilstm_forward.1']
    #allocation13 [shape = 'u8[512]{0}', space=smem, size = 0x200, scoped, tag = 'input window, operand 1, single buffered']
    #allocation14 [shape = 's32[1]{0}', space=sflag, size = 0x4, scoped, tag = 'scoped memory for customed_bilstm_forward.1']
    #allocation15 [shape = 'u8[36864]{0}', space=vmem, size = 0x9000, scoped, tag = 'input window, operand 5, single buffered']
    #allocation16 [shape = 'u8[4096]{0}', space=vmem, size = 0x1000, scoped, tag = 'output window, operand 0, single buffered']
    %12 = vsyncpa [#allocation12], 0
    %13 = vsyncpa [#allocation14], 0
    %14 = vsyncpa [#allocation10], 0
    %15 = vsyncpa [#allocation11], 0
    // Predicated region
    $region2: #{customed_bilstm_forward.1} parent=1 // pred_check
      _
    $region3: #{customed_bilstm_forward.1} parent=1 // pred_check_branch
      %17 = sbr.rel (0) target = $region5
    $region4: #{customed_bilstm_forward.1} parent=1 // pred_region
      %19 = vsyncadd [#allocation12], 0
      %s21 = sshll.u32 %s0, 4
      %s22 = int_to_ptr.vmem [resolvable:$true] %s21
      %24 = dma.vmem_to_smem %s22, 16, [#allocation9], [#allocation12]
    $region5: #{customed_bilstm_forward.1} parent=1 // pred_fallthru
      _
    // Predicated region
    $region6: #{customed_bilstm_forward.1} parent=1 // pred_check
      _
    $region7: #{customed_bilstm_forward.1} parent=1 // pred_check_branch
      %26 = sbr.rel (0) target = $region9
    $region8: #{customed_bilstm_forward.1} parent=1 // pred_region
      %28 = vsyncadd [#allocation14], 0
      %s30 = sshll.u32 %s1, 4
      %s31 = int_to_ptr.vmem [resolvable:$true] %s30
      %33 = dma.vmem_to_smem %s31, 16, [#allocation13], [#allocation14]
    $region9: #{customed_bilstm_forward.1} parent=1 // pred_fallthru
      _
    // Predicated region
    $region10: #{customed_bilstm_forward.1} parent=1 // pred_check
      _
    $region11: #{customed_bilstm_forward.1} parent=1 // pred_check_branch
      %35 = sbr.rel (0) target = $region13
    $region12: #{customed_bilstm_forward.1} parent=1 // pred_region
      _
    $region13: #{customed_bilstm_forward.1} parent=1 // pred_fallthru
      _
    // Predicated region
    $region14: #{customed_bilstm_forward.1} parent=1 // pred_check
      _
    $region15: #{customed_bilstm_forward.1} parent=1 // pred_check_branch
      %37 = sbr.rel (0) target = $region17
    $region16: #{customed_bilstm_forward.1} parent=1 // pred_region
      _
    $region17: #{customed_bilstm_forward.1} parent=1 // pred_fallthru
      _
    // Predicated region
    $region18: #{customed_bilstm_forward.1} parent=1 // pred_check
      _
    $region19: #{customed_bilstm_forward.1} parent=1 // pred_check_branch
      %39 = sbr.rel (0) target = $region21
    $region20: #{customed_bilstm_forward.1} parent=1 // pred_region
      _
    $region21: #{customed_bilstm_forward.1} parent=1 // pred_fallthru
      _
    // Predicated region
    $region22: #{customed_bilstm_forward.1} parent=1 // pred_check
      _
    $region23: #{customed_bilstm_forward.1} parent=1 // pred_check_branch
      %41 = sbr.rel (0) target = $region25
    $region24: #{customed_bilstm_forward.1} parent=1 // pred_region
      %43 = vsyncadd [#allocation10], 0
      %s44 = sshll.u32 %s5, 4
      %s45 = int_to_ptr.hbm [resolvable:$true] %s44
      %s46 = sshll.u32 [#allocation15], 4
      %s47 = int_to_ptr.vmem [resolvable:$true] %s46
      %52 = dma.hbm_to_vmem [thread:$0]  %s45, 1152, %s47, [#allocation10], 128, 128, 8
    $region25: #{customed_bilstm_forward.1} parent=1 // pred_fallthru
      _
    // Predicated region
    $region26: #{customed_bilstm_forward.1} parent=1 // pred_check
      _
    $region27: #{customed_bilstm_forward.1} parent=1 // pred_check_branch
      %54 = sbr.rel (0) target = $region29
    $region28: #{customed_bilstm_forward.1} parent=1 // pred_region
      _
    $region29: #{customed_bilstm_forward.1} parent=1 // pred_fallthru
      _
    // Predicated region
    $region30: #{customed_bilstm_forward.1} parent=1 // pred_check
      _
    $region31: #{customed_bilstm_forward.1} parent=1 // pred_check_branch
      %56 = sbr.rel (0) target = $region33
    $region32: #{customed_bilstm_forward.1} parent=1 // pred_region
      %58 = dma.done [#allocation12], 16
    $region33: #{customed_bilstm_forward.1} parent=1 // pred_fallthru
      _
    // Predicated region
    $region34: #{customed_bilstm_forward.1} parent=1 // pred_check
      _
    $region35: #{customed_bilstm_forward.1} parent=1 // pred_check_branch
      %60 = sbr.rel (0) target = $region37
    $region36: #{customed_bilstm_forward.1} parent=1 // pred_region
      %62 = dma.done [#allocation14], 16
    $region37: #{customed_bilstm_forward.1} parent=1 // pred_fallthru
      _
    // Predicated region
    $region38: #{customed_bilstm_forward.1} parent=1 // pred_check
      _
    $region39: #{customed_bilstm_forward.1} parent=1 // pred_check_branch
      %64 = sbr.rel (0) target = $region41
    $region40: #{customed_bilstm_forward.1} parent=1 // pred_region
      %66 = dma.done [#allocation10], 1152
    $region41: #{customed_bilstm_forward.1} parent=1 // pred_fallthru
      _
    %67 = sfence
    %s69 = sld [smem:[#allocation9]]
    %s70 = scalar_lea.vmem %s2, %s69
    %v71 = vld [vmem:[%s70] sm:$0x1]
    %vm72 = vcmask 57344
    %73 = vst.msk [vmem:[#allocation2] sm:$0x1] %vm72, %v71
    %s74 = sld [smem:[#allocation13]]
    %s75 = scalar_lea.vmem %s3, %s74
    %v76 = vld [vmem:[%s75] sm:$0x1]
    %vm77 = vcmask 122880
    %78 = vst.msk [vmem:[#allocation3] sm:$0x1] %vm77, %v76
    %s79 = sld [smem:[#allocation9 + $0x1]]
    %s80 = scalar_lea.vmem %s2, %s79
    %v81 = vld [vmem:[%s80] sm:$0x1]
    %82 = vst.msk [vmem:[#allocation2 + $0x1] sm:$0x1] %vm72, %v81
    %s83 = sld [smem:[#allocation13 + $0x1]]
    %s84 = scalar_lea.vmem %s3, %s83
    %v85 = vld [vmem:[%s84] sm:$0x1]
    %86 = vst.msk [vmem:[#allocation3 + $0x1] sm:$0x1] %vm77, %v85
    %s87 = sld [smem:[#allocation9 + $0x2]]
    %s88 = scalar_lea.vmem %s2, %s87
    %v89 = vld [vmem:[%s88] sm:$0x1]
    %90 = vst.msk [vmem:[#allocation2 + $0x2] sm:$0x1] %vm72, %v89
    %s91 = sld [smem:[#allocation13 + $0x2]]
    %s92 = scalar_lea.vmem %s3, %s91
    %v93 = vld [vmem:[%s92] sm:$0x1]
    %94 = vst.msk [vmem:[#allocation3 + $0x2] sm:$0x1] %vm77, %v93
    %s95 = sld [smem:[#allocation9 + $0x3]]
    %s96 = scalar_lea.vmem %s2, %s95
    %v97 = vld [vmem:[%s96] sm:$0x1]
    %98 = vst.msk [vmem:[#allocation2 + $0x3] sm:$0x1] %vm72, %v97
    %s99 = sld [smem:[#allocation13 + $0x3]]
    %s100 = scalar_lea.vmem %s3, %s99
    %v101 = vld [vmem:[%s100] sm:$0x1]
    %102 = vst.msk [vmem:[#allocation3 + $0x3] sm:$0x1] %vm77, %v101
    %s103 = sld [smem:[#allocation9 + $0x4]]
    %s104 = scalar_lea.vmem %s2, %s103
    %v105 = vld [vmem:[%s104] sm:$0x1]
    %106 = vst.msk [vmem:[#allocation2 + $0x4] sm:$0x1] %vm72, %v105
    %s107 = sld [smem:[#allocation13 + $0x4]]
    %s108 = scalar_lea.vmem %s3, %s107
    %v109 = vld [vmem:[%s108] sm:$0x1]
    %110 = vst.msk [vmem:[#allocation3 + $0x4] sm:$0x1] %vm77, %v109
    %s111 = sld [smem:[#allocation9 + $0x5]]
    %s112 = scalar_lea.vmem %s2, %s111
    %v113 = vld [vmem:[%s112] sm:$0x1]
    %114 = vst.msk [vmem:[#allocation2 + $0x5] sm:$0x1] %vm72, %v113
    %s115 = sld [smem:[#allocation13 + $0x5]]
    %s116 = scalar_lea.vmem %s3, %s115
    %v117 = vld [vmem:[%s116] sm:$0x1]
    %118 = vst.msk [vmem:[#allocation3 + $0x5] sm:$0x1] %vm77, %v117
    %s119 = sld [smem:[#allocation9 + $0x6]]
    %s120 = scalar_lea.vmem %s2, %s119
    %v121 = vld [vmem:[%s120] sm:$0x1]
    %122 = vst.msk [vmem:[#allocation2 + $0x6] sm:$0x1] %vm72, %v121
    %s123 = sld [smem:[#allocation13 + $0x6]]
    %s124 = scalar_lea.vmem %s3, %s123
    %v125 = vld [vmem:[%s124] sm:$0x1]
    %126 = vst.msk [vmem:[#allocation3 + $0x6] sm:$0x1] %vm77, %v125
    %s127 = sld [smem:[#allocation9 + $0x7]]
    %s128 = scalar_lea.vmem %s2, %s127
    %v129 = vld [vmem:[%s128] sm:$0x1]
    %130 = vst.msk [vmem:[#allocation2 + $0x7] sm:$0x1] %vm72, %v129
    %s131 = sld [smem:[#allocation13 + $0x7]]
    %s132 = scalar_lea.vmem %s3, %s131
    %v133 = vld [vmem:[%s132] sm:$0x1]
    %134 = vst.msk [vmem:[#allocation3 + $0x7] sm:$0x1] %vm77, %v133
    %v135 = vld [vmem:[#allocation2] sm:$0xff]
    %v136 = vpack.c.bf16 %v135, %v135
    %v137 = vld [vmem:[%s4] sm:$0xf]
    %v138 = vld [vmem:[%s4 + $0xc] sm:$0x1]
    %v139 = vunpack.c.l.bf16 %v138
    %v140 = vperm.slane %v139, 0
    %vm141 = vcmask 64512
    %v143 = vsel %vm141, %v136, 0
    %vm145 = vcmask 1043456
    %v147 = vsel %vm145, %v137, 0
    %149 = vmatpush.bf16.msra.mxu0 0
    %150 = vmatpush.bf16.msra.mxu0 0
    %151 = vmatpush.bf16.msra.mxu0 0
    %152 = vmatpush.bf16.msra.mxu0 0
    %153 = vmatpush.bf16.msra.mxu0 0
    %154 = vmatpush.bf16.msra.mxu0 0
    %155 = vmatpush.bf16.msra.mxu0 0
    %156 = vmatpush.bf16.msra.mxu0 %v147
    %157 = vmatmul.bf16.gmra.mxu0 %v143
    %v158 = vpop.f32.mrf.mxu0
    %v159 = vadd.f32 %v140, %v158
    %v160 = vpop.f32.mrf.mxu0
    %161 = vdwg.mxu0
    %vm162 = vcmask 523264
    %163 = vst.msk [vmem:[#allocation4] sm:$0xff] %vm162, %v159
    %v164 = vld [vmem:[%s4 + $0x4] sm:$0xf]
    %v165 = vld [vmem:[%s4 + $0x8] sm:$0xf]
    %v166 = vld [vmem:[#allocation4] sm:$0x1]
    %v169 = vunpack.c.l.b16 %v164
    %v170 = vunpack.c.l.b16 %v165
    %v171 = vpack.c.b16 %v170, %v169
    %vm173 = vcmask 130048
    %v175 = vsel %vm173, 0, 0
    %177 = vmatpush.bf16.msra.mxu0 0
    %178 = vmatpush.bf16.msra.mxu0 0
    %179 = vmatpush.bf16.msra.mxu0 0
    %180 = vmatpush.bf16.msra.mxu0 0
    %181 = vmatpush.bf16.msra.mxu0 0
    %182 = vmatpush.bf16.msra.mxu0 0
    %183 = vmatpush.bf16.msra.mxu0 0
    %184 = vmatpush.bf16.msra.mxu0 %v171
    %185 = vmatmul.bf16.gmra.mxu0 %v175
    %v186 = vpop.f32.mrf.mxu0
    %v187 = vadd.f32 0.0, %v186
    %v188 = vpop.f32.mrf.mxu0
    %189 = vdwg.mxu0
    %v190 = vadd.f32 %v166, %v187
    %v191 = vxor.u32 %v190, 2147483648
    %v192 = vmul.f32 %v191, 1.442695
    %v193 = vpow.pop %v192
    %v194 = vadd.f32 %v193, 1.0
    %v195 = vrcp.pop %v194
    %v196 = vmul.f32 %v194, %v195
    %v197 = vsub.f32 1.0, %v196
    %v198 = vmul.f32 %v195, %v197
    %v199 = vadd.f32 %v195, %v198
    %vm200 = vweird.f32 %v194
    %vm201 = vweird.f32 %v195
    %vm202 = vmor %vm200, %vm201
    %v203 = vsel %vm202, %v195, %v199
    %v204 = vand.u32 2147483647, %v194
    %vm205 = vcmp.eq.f32.partialorder %v204, 8.507059e+37
    %v206 = vand.u32 %v194, 2147483648
    %v207 = vor.u32 1.1754944e-38, %v206
    %v208 = vsel %vm205, %v207, %v203
    %v209 = vmul.f32 1.0, %v208
    %v210 = vtanh.pop %v190
    %v211 = vmul.f32 %v209, 0.0
    %213 = vrot.lane.b32.xlu0 %v210, 96
    %v214 = vpop.permute.xlu0 %213
    %v216 = vmul.f32 %v209, %v214
    %218 = vrot.lane.b32.xlu0 %v216, 16
    %v219 = vpop.permute.xlu0 %218
    %v221 = vadd.f32 %v211, %v219
    %v222 = vtanh.pop %v221
    %224 = vrot.lane.b32.xlu0 %v222, 32
    %v225 = vpop.permute.xlu0 %224
    %v227 = vmul.f32 %v209, %v225
    %229 = vrot.lane.b32.xlu0 %v227, 80
    %v230 = vpop.permute.xlu0 %229
    %232 = vst.msk [vmem:[#allocation5] sm:$0x1] %vm77, %v230
    %v233 = vld [vmem:[#allocation4 + $0x1] sm:$0x1]
    %v234 = vpack.c.bf16 %v227, %v227
    %236 = vrot.lane.b32.xlu0 %v234, 80
    %v237 = vpop.permute.xlu0 %236
    %v239 = vsel %vm173, %v237, 0
    %241 = vmatpush.bf16.msra.mxu0 0
    %242 = vmatpush.bf16.msra.mxu0 0
    %243 = vmatpush.bf16.msra.mxu0 0
    %244 = vmatpush.bf16.msra.mxu0 0
    %245 = vmatpush.bf16.msra.mxu0 0
    %246 = vmatpush.bf16.msra.mxu0 0
    %247 = vmatpush.bf16.msra.mxu0 0
    %248 = vmatpush.bf16.msra.mxu0 %v171
    %249 = vmatmul.bf16.gmra.mxu0 %v239
    %v250 = vpop.f32.mrf.mxu0
    %v251 = vadd.f32 0.0, %v250
    %v252 = vpop.f32.mrf.mxu0
    %253 = vdwg.mxu0
    %v254 = vadd.f32 %v233, %v251
    %v255 = vxor.u32 %v254, 2147483648
    %v256 = vmul.f32 %v255, 1.442695
    %v257 = vpow.pop %v256
    %v258 = vadd.f32 %v257, 1.0
    %v259 = vrcp.pop %v258
    %v260 = vmul.f32 %v258, %v259
    %v261 = vsub.f32 1.0, %v260
    %v262 = vmul.f32 %v259, %v261
    %v263 = vadd.f32 %v259, %v262
    %vm264 = vweird.f32 %v258
    %vm265 = vweird.f32 %v259
    %vm266 = vmor %vm264, %vm265
    %v267 = vsel %vm266, %v259, %v263
    %v268 = vand.u32 2147483647, %v258
    %vm269 = vcmp.eq.f32.partialorder %v268, 8.507059e+37
    %v270 = vand.u32 %v258, 2147483648
    %v271 = vor.u32 1.1754944e-38, %v270
    %v272 = vsel %vm269, %v271, %v267
    %v273 = vmul.f32 1.0, %v272
    %v274 = vtanh.pop %v254
    %v275 = vmul.f32 %v273, %v221
    %277 = vrot.lane.b32.xlu0 %v274, 96
    %v278 = vpop.permute.xlu0 %277
    %v280 = vmul.f32 %v273, %v278
    %282 = vrot.lane.b32.xlu0 %v280, 16
    %v283 = vpop.permute.xlu0 %282
    %v285 = vadd.f32 %v275, %v283
    %v286 = vtanh.pop %v285
    %288 = vrot.lane.b32.xlu0 %v286, 32
    %v289 = vpop.permute.xlu0 %288
    %v291 = vmul.f32 %v273, %v289
    %293 = vrot.lane.b32.xlu0 %v291, 80
    %v294 = vpop.permute.xlu0 %293
    %296 = vst.msk [vmem:[#allocation5 + $0x1] sm:$0x1] %vm77, %v294
    %v297 = vld [vmem:[#allocation4 + $0x2] sm:$0x1]
    %v298 = vpack.c.bf16 %v291, %v291
    %300 = vrot.lane.b32.xlu0 %v298, 80
    %v301 = vpop.permute.xlu0 %300
    %v303 = vsel %vm173, %v301, 0
    %305 = vmatpush.bf16.msra.mxu0 0
    %306 = vmatpush.bf16.msra.mxu0 0
    %307 = vmatpush.bf16.msra.mxu0 0
    %308 = vmatpush.bf16.msra.mxu0 0
    %309 = vmatpush.bf16.msra.mxu0 0
    %310 = vmatpush.bf16.msra.mxu0 0
    %311 = vmatpush.bf16.msra.mxu0 0
    %312 = vmatpush.bf16.msra.mxu0 %v171
    %313 = vmatmul.bf16.gmra.mxu0 %v303
    %v314 = vpop.f32.mrf.mxu0
    %v315 = vadd.f32 0.0, %v314
    %v316 = vpop.f32.mrf.mxu0
    %317 = vdwg.mxu0
    %v318 = vadd.f32 %v297, %v315
    %v319 = vxor.u32 %v318, 2147483648
    %v320 = vmul.f32 %v319, 1.442695
    %v321 = vpow.pop %v320
    %v322 = vadd.f32 %v321, 1.0
    %v323 = vrcp.pop %v322
    %v324 = vmul.f32 %v322, %v323
    %v325 = vsub.f32 1.0, %v324
    %v326 = vmul.f32 %v323, %v325
    %v327 = vadd.f32 %v323, %v326
    %vm328 = vweird.f32 %v322
    %vm329 = vweird.f32 %v323
    %vm330 = vmor %vm328, %vm329
    %v331 = vsel %vm330, %v323, %v327
    %v332 = vand.u32 2147483647, %v322
    %vm333 = vcmp.eq.f32.partialorder %v332, 8.507059e+37
    %v334 = vand.u32 %v322, 2147483648
    %v335 = vor.u32 1.1754944e-38, %v334
    %v336 = vsel %vm333, %v335, %v331
    %v337 = vmul.f32 1.0, %v336
    %v338 = vtanh.pop %v318
    %v339 = vmul.f32 %v337, %v285
    %341 = vrot.lane.b32.xlu0 %v338, 96
    %v342 = vpop.permute.xlu0 %341
    %v344 = vmul.f32 %v337, %v342
    %346 = vrot.lane.b32.xlu0 %v344, 16
    %v347 = vpop.permute.xlu0 %346
    %v349 = vadd.f32 %v339, %v347
    %v350 = vtanh.pop %v349
    %352 = vrot.lane.b32.xlu0 %v350, 32
    %v353 = vpop.permute.xlu0 %352
    %v355 = vmul.f32 %v337, %v353
    %357 = vrot.lane.b32.xlu0 %v355, 80
    %v358 = vpop.permute.xlu0 %357
    %360 = vst.msk [vmem:[#allocation5 + $0x2] sm:$0x1] %vm77, %v358
    %v361 = vld [vmem:[#allocation4 + $0x3] sm:$0x1]
    %v362 = vpack.c.bf16 %v355, %v355
    %364 = vrot.lane.b32.xlu0 %v362, 80
    %v365 = vpop.permute.xlu0 %364
    %v367 = vsel %vm173, %v365, 0
    %369 = vmatpush.bf16.msra.mxu0 0
    %370 = vmatpush.bf16.msra.mxu0 0
    %371 = vmatpush.bf16.msra.mxu0 0
    %372 = vmatpush.bf16.msra.mxu0 0
    %373 = vmatpush.bf16.msra.mxu0 0
    %374 = vmatpush.bf16.msra.mxu0 0
    %375 = vmatpush.bf16.msra.mxu0 0
    %376 = vmatpush.bf16.msra.mxu0 %v171
    %377 = vmatmul.bf16.gmra.mxu0 %v367
    %v378 = vpop.f32.mrf.mxu0
    %v379 = vadd.f32 0.0, %v378
    %v380 = vpop.f32.mrf.mxu0
    %381 = vdwg.mxu0
    %v382 = vadd.f32 %v361, %v379
    %v383 = vxor.u32 %v382, 2147483648
    %v384 = vmul.f32 %v383, 1.442695
    %v385 = vpow.pop %v384
    %v386 = vadd.f32 %v385, 1.0
    %v387 = vrcp.pop %v386
    %v388 = vmul.f32 %v386, %v387
    %v389 = vsub.f32 1.0, %v388
    %v390 = vmul.f32 %v387, %v389
    %v391 = vadd.f32 %v387, %v390
    %vm392 = vweird.f32 %v386
    %vm393 = vweird.f32 %v387
    %vm394 = vmor %vm392, %vm393
    %v395 = vsel %vm394, %v387, %v391
    %v396 = vand.u32 2147483647, %v386
    %vm397 = vcmp.eq.f32.partialorder %v396, 8.507059e+37
    %v398 = vand.u32 %v386, 2147483648
    %v399 = vor.u32 1.1754944e-38, %v398
    %v400 = vsel %vm397, %v399, %v395
    %v401 = vmul.f32 1.0, %v400
    %v402 = vtanh.pop %v382
    %v403 = vmul.f32 %v401, %v349
    %405 = vrot.lane.b32.xlu0 %v402, 96
    %v406 = vpop.permute.xlu0 %405
    %v408 = vmul.f32 %v401, %v406
    %410 = vrot.lane.b32.xlu0 %v408, 16
    %v411 = vpop.permute.xlu0 %410
    %v413 = vadd.f32 %v403, %v411
    %v414 = vtanh.pop %v413
    %416 = vrot.lane.b32.xlu0 %v414, 32
    %v417 = vpop.permute.xlu0 %416
    %v419 = vmul.f32 %v401, %v417
    %421 = vrot.lane.b32.xlu0 %v419, 80
    %v422 = vpop.permute.xlu0 %421
    %424 = vst.msk [vmem:[#allocation5 + $0x3] sm:$0x1] %vm77, %v422
    %v425 = vld [vmem:[#allocation4 + $0x4] sm:$0x1]
    %v426 = vpack.c.bf16 %v419, %v419
    %428 = vrot.lane.b32.xlu0 %v426, 80
    %v429 = vpop.permute.xlu0 %428
    %v431 = vsel %vm173, %v429, 0
    %433 = vmatpush.bf16.msra.mxu0 0
    %434 = vmatpush.bf16.msra.mxu0 0
    %435 = vmatpush.bf16.msra.mxu0 0
    %436 = vmatpush.bf16.msra.mxu0 0
    %437 = vmatpush.bf16.msra.mxu0 0
    %438 = vmatpush.bf16.msra.mxu0 0
    %439 = vmatpush.bf16.msra.mxu0 0
    %440 = vmatpush.bf16.msra.mxu0 %v171
    %441 = vmatmul.bf16.gmra.mxu0 %v431
    %v442 = vpop.f32.mrf.mxu0
    %v443 = vadd.f32 0.0, %v442
    %v444 = vpop.f32.mrf.mxu0
    %445 = vdwg.mxu0
    %v446 = vadd.f32 %v425, %v443
    %v447 = vxor.u32 %v446, 2147483648
    %v448 = vmul.f32 %v447, 1.442695
    %v449 = vpow.pop %v448
    %v450 = vadd.f32 %v449, 1.0
    %v451 = vrcp.pop %v450
    %v452 = vmul.f32 %v450, %v451
    %v453 = vsub.f32 1.0, %v452
    %v454 = vmul.f32 %v451, %v453
    %v455 = vadd.f32 %v451, %v454
    %vm456 = vweird.f32 %v450
    %vm457 = vweird.f32 %v451
    %vm458 = vmor %vm456, %vm457
    %v459 = vsel %vm458, %v451, %v455
    %v460 = vand.u32 2147483647, %v450
    %vm461 = vcmp.eq.f32.partialorder %v460, 8.507059e+37
    %v462 = vand.u32 %v450, 2147483648
    %v463 = vor.u32 1.1754944e-38, %v462
    %v464 = vsel %vm461, %v463, %v459
    %v465 = vmul.f32 1.0, %v464
    %v466 = vtanh.pop %v446
    %v467 = vmul.f32 %v465, %v413
    %469 = vrot.lane.b32.xlu0 %v466, 96
    %v470 = vpop.permute.xlu0 %469
    %v472 = vmul.f32 %v465, %v470
    %474 = vrot.lane.b32.xlu0 %v472, 16
    %v475 = vpop.permute.xlu0 %474
    %v477 = vadd.f32 %v467, %v475
    %v478 = vtanh.pop %v477
    %480 = vrot.lane.b32.xlu0 %v478, 32
    %v481 = vpop.permute.xlu0 %480
    %v483 = vmul.f32 %v465, %v481
    %485 = vrot.lane.b32.xlu0 %v483, 80
    %v486 = vpop.permute.xlu0 %485
    %488 = vst.msk [vmem:[#allocation5 + $0x4] sm:$0x1] %vm77, %v486
    %v489 = vld [vmem:[#allocation4 + $0x5] sm:$0x1]
    %v490 = vpack.c.bf16 %v483, %v483
    %492 = vrot.lane.b32.xlu0 %v490, 80
    %v493 = vpop.permute.xlu0 %492
    %v495 = vsel %vm173, %v493, 0
    %497 = vmatpush.bf16.msra.mxu0 0
    %498 = vmatpush.bf16.msra.mxu0 0
    %499 = vmatpush.bf16.msra.mxu0 0
    %500 = vmatpush.bf16.msra.mxu0 0
    %501 = vmatpush.bf16.msra.mxu0 0
    %502 = vmatpush.bf16.msra.mxu0 0
    %503 = vmatpush.bf16.msra.mxu0 0
    %504 = vmatpush.bf16.msra.mxu0 %v171
    %505 = vmatmul.bf16.gmra.mxu0 %v495
    %v506 = vpop.f32.mrf.mxu0
    %v507 = vadd.f32 0.0, %v506
    %v508 = vpop.f32.mrf.mxu0
    %509 = vdwg.mxu0
    %v510 = vadd.f32 %v489, %v507
    %v511 = vxor.u32 %v510, 2147483648
    %v512 = vmul.f32 %v511, 1.442695
    %v513 = vpow.pop %v512
    %v514 = vadd.f32 %v513, 1.0
    %v515 = vrcp.pop %v514
    %v516 = vmul.f32 %v514, %v515
    %v517 = vsub.f32 1.0, %v516
    %v518 = vmul.f32 %v515, %v517
    %v519 = vadd.f32 %v515, %v518
    %vm520 = vweird.f32 %v514
    %vm521 = vweird.f32 %v515
    %vm522 = vmor %vm520, %vm521
    %v523 = vsel %vm522, %v515, %v519
    %v524 = vand.u32 2147483647, %v514
    %vm525 = vcmp.eq.f32.partialorder %v524, 8.507059e+37
    %v526 = vand.u32 %v514, 2147483648
    %v527 = vor.u32 1.1754944e-38, %v526
    %v528 = vsel %vm525, %v527, %v523
    %v529 = vmul.f32 1.0, %v528
    %v530 = vtanh.pop %v510
    %v531 = vmul.f32 %v529, %v477
    %533 = vrot.lane.b32.xlu0 %v530, 96
    %v534 = vpop.permute.xlu0 %533
    %v536 = vmul.f32 %v529, %v534
    %538 = vrot.lane.b32.xlu0 %v536, 16
    %v539 = vpop.permute.xlu0 %538
    %v541 = vadd.f32 %v531, %v539
    %v542 = vtanh.pop %v541
    %544 = vrot.lane.b32.xlu0 %v542, 32
    %v545 = vpop.permute.xlu0 %544
    %v547 = vmul.f32 %v529, %v545
    %549 = vrot.lane.b32.xlu0 %v547, 80
    %v550 = vpop.permute.xlu0 %549
    %552 = vst.msk [vmem:[#allocation5 + $0x5] sm:$0x1] %vm77, %v550
    %v553 = vld [vmem:[#allocation4 + $0x6] sm:$0x1]
    %v554 = vpack.c.bf16 %v547, %v547
    %556 = vrot.lane.b32.xlu0 %v554, 80
    %v557 = vpop.permute.xlu0 %556
    %v559 = vsel %vm173, %v557, 0
    %561 = vmatpush.bf16.msra.mxu0 0
    %562 = vmatpush.bf16.msra.mxu0 0
    %563 = vmatpush.bf16.msra.mxu0 0
    %564 = vmatpush.bf16.msra.mxu0 0
    %565 = vmatpush.bf16.msra.mxu0 0
    %566 = vmatpush.bf16.msra.mxu0 0
    %567 = vmatpush.bf16.msra.mxu0 0
    %568 = vmatpush.bf16.msra.mxu0 %v171
    %569 = vmatmul.bf16.gmra.mxu0 %v559
    %v570 = vpop.f32.mrf.mxu0
    %v571 = vadd.f32 0.0, %v570
    %v572 = vpop.f32.mrf.mxu0
    %573 = vdwg.mxu0
    %v574 = vadd.f32 %v553, %v571
    %v575 = vxor.u32 %v574, 2147483648
    %v576 = vmul.f32 %v575, 1.442695
    %v577 = vpow.pop %v576
    %v578 = vadd.f32 %v577, 1.0
    %v579 = vrcp.pop %v578
    %v580 = vmul.f32 %v578, %v579
    %v581 = vsub.f32 1.0, %v580
    %v582 = vmul.f32 %v579, %v581
    %v583 = vadd.f32 %v579, %v582
    %vm584 = vweird.f32 %v578
    %vm585 = vweird.f32 %v579
    %vm586 = vmor %vm584, %vm585
    %v587 = vsel %vm586, %v579, %v583
    %v588 = vand.u32 2147483647, %v578
    %vm589 = vcmp.eq.f32.partialorder %v588, 8.507059e+37
    %v590 = vand.u32 %v578, 2147483648
    %v591 = vor.u32 1.1754944e-38, %v590
    %v592 = vsel %vm589, %v591, %v587
    %v593 = vmul.f32 1.0, %v592
    %v594 = vtanh.pop %v574
    %v595 = vmul.f32 %v593, %v541
    %597 = vrot.lane.b32.xlu0 %v594, 96
    %v598 = vpop.permute.xlu0 %597
    %v600 = vmul.f32 %v593, %v598
    %602 = vrot.lane.b32.xlu0 %v600, 16
    %v603 = vpop.permute.xlu0 %602
    %v605 = vadd.f32 %v595, %v603
    %v606 = vtanh.pop %v605
    %608 = vrot.lane.b32.xlu0 %v606, 32
    %v609 = vpop.permute.xlu0 %608
    %v611 = vmul.f32 %v593, %v609
    %613 = vrot.lane.b32.xlu0 %v611, 80
    %v614 = vpop.permute.xlu0 %613
    %616 = vst.msk [vmem:[#allocation5 + $0x6] sm:$0x1] %vm77, %v614
    %v617 = vld [vmem:[#allocation4 + $0x7] sm:$0x1]
    %v618 = vpack.c.bf16 %v611, %v611
    %620 = vrot.lane.b32.xlu0 %v618, 80
    %v621 = vpop.permute.xlu0 %620
    %v623 = vsel %vm173, %v621, 0
    %625 = vmatpush.bf16.msra.mxu0 0
    %626 = vmatpush.bf16.msra.mxu0 0
    %627 = vmatpush.bf16.msra.mxu0 0
    %628 = vmatpush.bf16.msra.mxu0 0
    %629 = vmatpush.bf16.msra.mxu0 0
    %630 = vmatpush.bf16.msra.mxu0 0
    %631 = vmatpush.bf16.msra.mxu0 0
    %632 = vmatpush.bf16.msra.mxu0 %v171
    %633 = vmatmul.bf16.gmra.mxu0 %v623
    %v634 = vpop.f32.mrf.mxu0
    %v635 = vadd.f32 0.0, %v634
    %v636 = vpop.f32.mrf.mxu0
    %637 = vdwg.mxu0
    %v638 = vadd.f32 %v617, %v635
    %v639 = vxor.u32 %v638, 2147483648
    %v640 = vmul.f32 %v639, 1.442695
    %v641 = vpow.pop %v640
    %v642 = vadd.f32 %v641, 1.0
    %v643 = vrcp.pop %v642
    %v644 = vmul.f32 %v642, %v643
    %v645 = vsub.f32 1.0, %v644
    %v646 = vmul.f32 %v643, %v645
    %v647 = vadd.f32 %v643, %v646
    %vm648 = vweird.f32 %v642
    %vm649 = vweird.f32 %v643
    %vm650 = vmor %vm648, %vm649
    %v651 = vsel %vm650, %v643, %v647
    %v652 = vand.u32 2147483647, %v642
    %vm653 = vcmp.eq.f32.partialorder %v652, 8.507059e+37
    %v654 = vand.u32 %v642, 2147483648
    %v655 = vor.u32 1.1754944e-38, %v654
    %v656 = vsel %vm653, %v655, %v651
    %v657 = vmul.f32 1.0, %v656
    %v658 = vtanh.pop %v638
    %v659 = vmul.f32 %v657, %v605
    %661 = vrot.lane.b32.xlu0 %v658, 96
    %v662 = vpop.permute.xlu0 %661
    %v664 = vmul.f32 %v657, %v662
    %666 = vrot.lane.b32.xlu0 %v664, 16
    %v667 = vpop.permute.xlu0 %666
    %v669 = vadd.f32 %v659, %v667
    %v670 = vtanh.pop %v669
    %672 = vrot.lane.b32.xlu0 %v670, 32
    %v673 = vpop.permute.xlu0 %672
    %v675 = vmul.f32 %v657, %v673
    %677 = vrot.lane.b32.xlu0 %v675, 80
    %v678 = vpop.permute.xlu0 %677
    %680 = vst.msk [vmem:[#allocation5 + $0x7] sm:$0x1] %vm77, %v678
    %v681 = vld [vmem:[#allocation5] sm:$0xff]
    %v682 = vpack.c.bf16 %v681, %v681
    %v683 = vld [vmem:[#allocation15] sm:$0xff]
    %v684 = vld [vmem:[#allocation15 + $0x8] sm:$0xff]
    %v685 = vld [vmem:[#allocation3] sm:$0xff]
    %v686 = vpack.c.bf16 %v685, %v685
    %v687 = vld [vmem:[#allocation15 + $0x10] sm:$0xff]
    %v688 = vld [vmem:[#allocation15 + $0x18] sm:$0xff]
    %v691 = vunpack.c.l.b16 %v687
    %v692 = vunpack.c.h.b16 %v687
    %v693 = vunpack.c.l.b16 %v688
    %v694 = vunpack.c.h.b16 %v688
    %v695 = vpack.c.b16 %v693, %v691
    %v696 = vpack.c.b16 %v694, %v692
    %v700 = vsel %vm173, %v686, 0
    %702 = vmatpush.bf16.msra.mxu0 0
    %703 = vmatpush.bf16.msra.mxu0 0
    %704 = vmatpush.bf16.msra.mxu0 0
    %705 = vmatpush.bf16.msra.mxu0 0
    %706 = vmatpush.bf16.msra.mxu0 0
    %707 = vmatpush.bf16.msra.mxu0 0
    %708 = vmatpush.bf16.msra.mxu0 0
    %709 = vmatpush.bf16.msra.mxu0 %v695
    %710 = vmatmul.bf16.gmra.mxu0 %v700
    %v711 = vpop.f32.mrf.mxu0
    %v712 = vadd.f32 0.0, %v711
    %v713 = vpop.f32.mrf.mxu0
    %714 = vdwg.mxu0
    %715 = vmatpush.bf16.msra.mxu0 0
    %716 = vmatpush.bf16.msra.mxu0 0
    %717 = vmatpush.bf16.msra.mxu0 0
    %718 = vmatpush.bf16.msra.mxu0 0
    %719 = vmatpush.bf16.msra.mxu0 0
    %720 = vmatpush.bf16.msra.mxu0 0
    %721 = vmatpush.bf16.msra.mxu0 0
    %722 = vmatpush.bf16.msra.mxu0 %v696
    %723 = vmatmul.bf16.gmra.mxu0 %v700
    %v724 = vpop.f32.mrf.mxu0
    %v725 = vadd.f32 0.0, %v724
    %v726 = vpop.f32.mrf.mxu0
    %727 = vdwg.mxu0
    %v730 = vunpack.c.l.b16 %v683
    %v731 = vunpack.c.h.b16 %v683
    %v732 = vunpack.c.l.b16 %v684
    %v733 = vunpack.c.h.b16 %v684
    %v734 = vpack.c.b16 %v732, %v730
    %v735 = vpack.c.b16 %v733, %v731
    %v739 = vsel %vm173, %v682, 0
    %741 = vmatpush.bf16.msra.mxu0 0
    %742 = vmatpush.bf16.msra.mxu0 0
    %743 = vmatpush.bf16.msra.mxu0 0
    %744 = vmatpush.bf16.msra.mxu0 0
    %745 = vmatpush.bf16.msra.mxu0 0
    %746 = vmatpush.bf16.msra.mxu0 0
    %747 = vmatpush.bf16.msra.mxu0 0
    %748 = vmatpush.bf16.msra.mxu0 %v734
    %749 = vmatmul.bf16.gmra.mxu0 %v739
    %v750 = vpop.f32.mrf.mxu0
    %v751 = vadd.f32 %v712, %v750
    %v752 = vpop.f32.mrf.mxu0
    %753 = vdwg.mxu0
    %754 = vmatpush.bf16.msra.mxu0 0
    %755 = vmatpush.bf16.msra.mxu0 0
    %756 = vmatpush.bf16.msra.mxu0 0
    %757 = vmatpush.bf16.msra.mxu0 0
    %758 = vmatpush.bf16.msra.mxu0 0
    %759 = vmatpush.bf16.msra.mxu0 0
    %760 = vmatpush.bf16.msra.mxu0 0
    %761 = vmatpush.bf16.msra.mxu0 %v735
    %762 = vmatmul.bf16.gmra.mxu0 %v739
    %v763 = vpop.f32.mrf.mxu0
    %v764 = vadd.f32 %v725, %v763
    %v765 = vpop.f32.mrf.mxu0
    %766 = vdwg.mxu0
    %v767 = vld [vmem:[#allocation15 + $0x40] sm:$0x11]
    %v768 = vunpack.c.l.bf16 %v767
    %v769 = vunpack.c.h.bf16 %v767
    %v770 = vperm.slane %v768, 0
    %v771 = vperm.slane %v769, 0
    %v772 = vadd.f32 %v751, %v770
    %v773 = vadd.f32 %v764, %v771
    %774 = vst [vmem:[#allocation8] sm:$0x1] %v772
    %775 = vst [vmem:[#allocation8 - $0x6] sm:$0x80] %v773
    %776 = vst [vmem:[#allocation8 + $0x1] sm:$0x2] %v772
    %777 = vst [vmem:[#allocation8 - $0x3] sm:$0x40] %v773
    %778 = vst [vmem:[#allocation8 + $0x2] sm:$0x4] %v772
    %779 = vst [vmem:[#allocation8] sm:$0x20] %v773
    %780 = vst [vmem:[#allocation8 + $0x3] sm:$0x8] %v772
    %781 = vst [vmem:[#allocation8 + $0x3] sm:$0x10] %v773
    %782 = vst [vmem:[#allocation8 + $0x4] sm:$0x10] %v772
    %783 = vst [vmem:[#allocation8 + $0x6] sm:$0x8] %v773
    %784 = vst [vmem:[#allocation8 + $0x5] sm:$0x20] %v772
    %785 = vst [vmem:[#allocation8 + $0x9] sm:$0x4] %v773
    %786 = vst [vmem:[#allocation8 + $0x6] sm:$0x40] %v772
    %787 = vst [vmem:[#allocation8 + $0xc] sm:$0x2] %v773
    %788 = vst [vmem:[#allocation8 + $0x7] sm:$0x80] %v772
    %789 = vst [vmem:[#allocation8 + $0xf] sm:$0x1] %v773
    %v790 = vld [vmem:[#allocation15 + $0x20] sm:$0xff]
    %v791 = vld [vmem:[#allocation15 + $0x28] sm:$0xff]
    %v792 = vld [vmem:[#allocation15 + $0x30] sm:$0xff]
    %v793 = vld [vmem:[#allocation15 + $0x38] sm:$0xff]
    %v794 = vlaneseq
    %v795 = vshrl.u32 %v794, 7
    %vm796 = vcmp.eq.s32.totalorder %v795, 0
    %v801 = vunpack.c.l.b16 %v790
    %v802 = vunpack.c.h.b16 %v790
    %v803 = vunpack.c.l.b16 %v791
    %v804 = vunpack.c.h.b16 %v791
    %v805 = vunpack.c.l.b16 %v792
    %v806 = vunpack.c.h.b16 %v792
    %v807 = vunpack.c.l.b16 %v793
    %v808 = vunpack.c.h.b16 %v793
    %v809 = vpack.c.b16 %v803, %v801
    %v810 = vpack.c.b16 %v804, %v802
    %v811 = vpack.c.b16 %v807, %v805
    %v812 = vpack.c.b16 %v808, %v806
    %vm817 = vcmask 261120
    %v818 = vsel %vm817, 0, 0
    %820 = vmatpush.bf16.msra.mxu0 0
    %821 = vmatpush.bf16.msra.mxu0 0
    %822 = vmatpush.bf16.msra.mxu0 0
    %823 = vmatpush.bf16.msra.mxu0 0
    %824 = vmatpush.bf16.msra.mxu0 0
    %825 = vmatpush.bf16.msra.mxu0 0
    %826 = vmatpush.bf16.msra.mxu0 %v811
    %827 = vmatpush.bf16.msra.mxu0 %v809
    %828 = vmatmul.bf16.gmra.mxu0 %v818
    %v829 = vpop.f32.mrf.mxu0
    %v830 = vadd.f32 0.0, %v829
    %v831 = vpop.f32.mrf.mxu0
    %832 = vdwg.mxu0
    %833 = vmatpush.bf16.msra.mxu0 0
    %834 = vmatpush.bf16.msra.mxu0 0
    %835 = vmatpush.bf16.msra.mxu0 0
    %836 = vmatpush.bf16.msra.mxu0 0
    %837 = vmatpush.bf16.msra.mxu0 0
    %838 = vmatpush.bf16.msra.mxu0 0
    %839 = vmatpush.bf16.msra.mxu0 %v812
    %840 = vmatpush.bf16.msra.mxu0 %v810
    %841 = vmatmul.bf16.gmra.mxu0 %v818
    %v842 = vpop.f32.mrf.mxu0
    %v843 = vadd.f32 0.0, %v842
    %v844 = vpop.f32.mrf.mxu0
    %845 = vdwg.mxu0
    %v846 = vsel %vm796, %v830, %v843
    %v847 = vld [vmem:[#allocation8] sm:$0x3]
    %v848 = vadd.f32 %v846, %v847
    %v849 = vxor.u32 %v848, 2147483648
    %v850 = vmul.f32 %v849, 1.442695
    %v851 = vpow.pop %v850
    %v852 = vadd.f32 %v851, 1.0
    %v853 = vrcp.pop %v852
    %v854 = vmul.f32 %v852, %v853
    %v855 = vsub.f32 1.0, %v854
    %v856 = vmul.f32 %v853, %v855
    %v857 = vadd.f32 %v853, %v856
    %vm858 = vweird.f32 %v852
    %vm859 = vweird.f32 %v853
    %vm860 = vmor %vm858, %vm859
    %v861 = vsel %vm860, %v853, %v857
    %v862 = vand.u32 2147483647, %v852
    %vm863 = vcmp.eq.f32.partialorder %v862, 8.507059e+37
    %v864 = vand.u32 %v852, 2147483648
    %v865 = vor.u32 1.1754944e-38, %v864
    %v866 = vsel %vm863, %v865, %v861
    %v867 = vmul.f32 1.0, %v866
    %v868 = vtanh.pop %v848
    %v869 = vmul.f32 %v867, 0.0
    %871 = vrot.lane.b32.xlu0 %v868, 64
    %v872 = vpop.permute.xlu0 %871
    %v874 = vmul.f32 %v867, %v872
    %876 = vrot.lane.b32.xlu0 %v874, 32
    %v877 = vpop.permute.xlu0 %876
    %v879 = vadd.f32 %v869, %v877
    %v880 = vtanh.pop %v879
    %882 = vrot.lane.b32.xlu0 %v880, 64
    %v883 = vpop.permute.xlu0 %882
    %v885 = vmul.f32 %v867, %v883
    %887 = vrot.lane.b32.xlu0 %v885, 32
    %v888 = vpop.permute.xlu0 %887
    %vm890 = vcmask 253952
    %891 = vst.msk [vmem:[#allocation6] sm:$0x1] %vm890, %v888
    %vm892 = vcmask 254977
    %893 = vst.msk [vmem:[#allocation7 + $0x6] sm:$0x2] %vm892, %v888
    %v894 = vpack.c.bf16 %v885, %v885
    %896 = vrot.lane.b32.xlu0 %v894, 32
    %v897 = vpop.permute.xlu0 %896
    %v899 = vsel %vm817, %v897, 0
    %901 = vmatpush.bf16.msra.mxu0 0
    %902 = vmatpush.bf16.msra.mxu0 0
    %903 = vmatpush.bf16.msra.mxu0 0
    %904 = vmatpush.bf16.msra.mxu0 0
    %905 = vmatpush.bf16.msra.mxu0 0
    %906 = vmatpush.bf16.msra.mxu0 0
    %907 = vmatpush.bf16.msra.mxu0 %v811
    %908 = vmatpush.bf16.msra.mxu0 %v809
    %909 = vmatmul.bf16.gmra.mxu0 %v899
    %v910 = vpop.f32.mrf.mxu0
    %v911 = vadd.f32 0.0, %v910
    %v912 = vpop.f32.mrf.mxu0
    %913 = vdwg.mxu0
    %914 = vmatpush.bf16.msra.mxu0 0
    %915 = vmatpush.bf16.msra.mxu0 0
    %916 = vmatpush.bf16.msra.mxu0 0
    %917 = vmatpush.bf16.msra.mxu0 0
    %918 = vmatpush.bf16.msra.mxu0 0
    %919 = vmatpush.bf16.msra.mxu0 0
    %920 = vmatpush.bf16.msra.mxu0 %v812
    %921 = vmatpush.bf16.msra.mxu0 %v810
    %922 = vmatmul.bf16.gmra.mxu0 %v899
    %v923 = vpop.f32.mrf.mxu0
    %v924 = vadd.f32 0.0, %v923
    %v925 = vpop.f32.mrf.mxu0
    %926 = vdwg.mxu0
    %v927 = vsel %vm796, %v911, %v924
    %v928 = vld [vmem:[#allocation8 + $0x2] sm:$0x3]
    %v929 = vadd.f32 %v927, %v928
    %v930 = vxor.u32 %v929, 2147483648
    %v931 = vmul.f32 %v930, 1.442695
    %v932 = vpow.pop %v931
    %v933 = vadd.f32 %v932, 1.0
    %v934 = vrcp.pop %v933
    %v935 = vmul.f32 %v933, %v934
    %v936 = vsub.f32 1.0, %v935
    %v937 = vmul.f32 %v934, %v936
    %v938 = vadd.f32 %v934, %v937
    %vm939 = vweird.f32 %v933
    %vm940 = vweird.f32 %v934
    %vm941 = vmor %vm939, %vm940
    %v942 = vsel %vm941, %v934, %v938
    %v943 = vand.u32 2147483647, %v933
    %vm944 = vcmp.eq.f32.partialorder %v943, 8.507059e+37
    %v945 = vand.u32 %v933, 2147483648
    %v946 = vor.u32 1.1754944e-38, %v945
    %v947 = vsel %vm944, %v946, %v942
    %v948 = vmul.f32 1.0, %v947
    %v949 = vtanh.pop %v929
    %v950 = vmul.f32 %v948, %v879
    %952 = vrot.lane.b32.xlu0 %v949, 64
    %v953 = vpop.permute.xlu0 %952
    %v955 = vmul.f32 %v948, %v953
    %957 = vrot.lane.b32.xlu0 %v955, 32
    %v958 = vpop.permute.xlu0 %957
    %v960 = vadd.f32 %v950, %v958
    %v961 = vtanh.pop %v960
    %963 = vrot.lane.b32.xlu0 %v961, 64
    %v964 = vpop.permute.xlu0 %963
    %v966 = vmul.f32 %v948, %v964
    %968 = vrot.lane.b32.xlu0 %v966, 32
    %v969 = vpop.permute.xlu0 %968
    %971 = vst.msk [vmem:[#allocation6 + $0x1] sm:$0x1] %vm890, %v969
    %972 = vst.msk [vmem:[#allocation7 + $0x5] sm:$0x2] %vm892, %v969
    %v973 = vpack.c.bf16 %v966, %v966
    %975 = vrot.lane.b32.xlu0 %v973, 32
    %v976 = vpop.permute.xlu0 %975
    %v978 = vsel %vm817, %v976, 0
    %980 = vmatpush.bf16.msra.mxu0 0
    %981 = vmatpush.bf16.msra.mxu0 0
    %982 = vmatpush.bf16.msra.mxu0 0
    %983 = vmatpush.bf16.msra.mxu0 0
    %984 = vmatpush.bf16.msra.mxu0 0
    %985 = vmatpush.bf16.msra.mxu0 0
    %986 = vmatpush.bf16.msra.mxu0 %v811
    %987 = vmatpush.bf16.msra.mxu0 %v809
    %988 = vmatmul.bf16.gmra.mxu0 %v978
    %v989 = vpop.f32.mrf.mxu0
    %v990 = vadd.f32 0.0, %v989
    %v991 = vpop.f32.mrf.mxu0
    %992 = vdwg.mxu0
    %993 = vmatpush.bf16.msra.mxu0 0
    %994 = vmatpush.bf16.msra.mxu0 0
    %995 = vmatpush.bf16.msra.mxu0 0
    %996 = vmatpush.bf16.msra.mxu0 0
    %997 = vmatpush.bf16.msra.mxu0 0
    %998 = vmatpush.bf16.msra.mxu0 0
    %999 = vmatpush.bf16.msra.mxu0 %v812
    %1000 = vmatpush.bf16.msra.mxu0 %v810
    %1001 = vmatmul.bf16.gmra.mxu0 %v978
    %v1002 = vpop.f32.mrf.mxu0
    %v1003 = vadd.f32 0.0, %v1002
    %v1004 = vpop.f32.mrf.mxu0
    %1005 = vdwg.mxu0
    %v1006 = vsel %vm796, %v990, %v1003
    %v1007 = vld [vmem:[#allocation8 + $0x4] sm:$0x3]
    %v1008 = vadd.f32 %v1006, %v1007
    %v1009 = vxor.u32 %v1008, 2147483648
    %v1010 = vmul.f32 %v1009, 1.442695
    %v1011 = vpow.pop %v1010
    %v1012 = vadd.f32 %v1011, 1.0
    %v1013 = vrcp.pop %v1012
    %v1014 = vmul.f32 %v1012, %v1013
    %v1015 = vsub.f32 1.0, %v1014
    %v1016 = vmul.f32 %v1013, %v1015
    %v1017 = vadd.f32 %v1013, %v1016
    %vm1018 = vweird.f32 %v1012
    %vm1019 = vweird.f32 %v1013
    %vm1020 = vmor %vm1018, %vm1019
    %v1021 = vsel %vm1020, %v1013, %v1017
    %v1022 = vand.u32 2147483647, %v1012
    %vm1023 = vcmp.eq.f32.partialorder %v1022, 8.507059e+37
    %v1024 = vand.u32 %v1012, 2147483648
    %v1025 = vor.u32 1.1754944e-38, %v1024
    %v1026 = vsel %vm1023, %v1025, %v1021
    %v1027 = vmul.f32 1.0, %v1026
    %v1028 = vtanh.pop %v1008
    %v1029 = vmul.f32 %v1027, %v960
    %1031 = vrot.lane.b32.xlu0 %v1028, 64
    %v1032 = vpop.permute.xlu0 %1031
    %v1034 = vmul.f32 %v1027, %v1032
    %1036 = vrot.lane.b32.xlu0 %v1034, 32
    %v1037 = vpop.permute.xlu0 %1036
    %v1039 = vadd.f32 %v1029, %v1037
    %v1040 = vtanh.pop %v1039
    %1042 = vrot.lane.b32.xlu0 %v1040, 64
    %v1043 = vpop.permute.xlu0 %1042
    %v1045 = vmul.f32 %v1027, %v1043
    %1047 = vrot.lane.b32.xlu0 %v1045, 32
    %v1048 = vpop.permute.xlu0 %1047
    %1050 = vst.msk [vmem:[#allocation6 + $0x2] sm:$0x1] %vm890, %v1048
    %1051 = vst.msk [vmem:[#allocation7 + $0x4] sm:$0x2] %vm892, %v1048
    %v1052 = vpack.c.bf16 %v1045, %v1045
    %1054 = vrot.lane.b32.xlu0 %v1052, 32
    %v1055 = vpop.permute.xlu0 %1054
    %v1057 = vsel %vm817, %v1055, 0
    %1059 = vmatpush.bf16.msra.mxu0 0
    %1060 = vmatpush.bf16.msra.mxu0 0
    %1061 = vmatpush.bf16.msra.mxu0 0
    %1062 = vmatpush.bf16.msra.mxu0 0
    %1063 = vmatpush.bf16.msra.mxu0 0
    %1064 = vmatpush.bf16.msra.mxu0 0
    %1065 = vmatpush.bf16.msra.mxu0 %v811
    %1066 = vmatpush.bf16.msra.mxu0 %v809
    %1067 = vmatmul.bf16.gmra.mxu0 %v1057
    %v1068 = vpop.f32.mrf.mxu0
    %v1069 = vadd.f32 0.0, %v1068
    %v1070 = vpop.f32.mrf.mxu0
    %1071 = vdwg.mxu0
    %1072 = vmatpush.bf16.msra.mxu0 0
    %1073 = vmatpush.bf16.msra.mxu0 0
    %1074 = vmatpush.bf16.msra.mxu0 0
    %1075 = vmatpush.bf16.msra.mxu0 0
    %1076 = vmatpush.bf16.msra.mxu0 0
    %1077 = vmatpush.bf16.msra.mxu0 0
    %1078 = vmatpush.bf16.msra.mxu0 %v812
    %1079 = vmatpush.bf16.msra.mxu0 %v810
    %1080 = vmatmul.bf16.gmra.mxu0 %v1057
    %v1081 = vpop.f32.mrf.mxu0
    %v1082 = vadd.f32 0.0, %v1081
    %v1083 = vpop.f32.mrf.mxu0
    %1084 = vdwg.mxu0
    %v1085 = vsel %vm796, %v1069, %v1082
    %v1086 = vld [vmem:[#allocation8 + $0x6] sm:$0x3]
    %v1087 = vadd.f32 %v1085, %v1086
    %v1088 = vxor.u32 %v1087, 2147483648
    %v1089 = vmul.f32 %v1088, 1.442695
    %v1090 = vpow.pop %v1089
    %v1091 = vadd.f32 %v1090, 1.0
    %v1092 = vrcp.pop %v1091
    %v1093 = vmul.f32 %v1091, %v1092
    %v1094 = vsub.f32 1.0, %v1093
    %v1095 = vmul.f32 %v1092, %v1094
    %v1096 = vadd.f32 %v1092, %v1095
    %vm1097 = vweird.f32 %v1091
    %vm1098 = vweird.f32 %v1092
    %vm1099 = vmor %vm1097, %vm1098
    %v1100 = vsel %vm1099, %v1092, %v1096
    %v1101 = vand.u32 2147483647, %v1091
    %vm1102 = vcmp.eq.f32.partialorder %v1101, 8.507059e+37
    %v1103 = vand.u32 %v1091, 2147483648
    %v1104 = vor.u32 1.1754944e-38, %v1103
    %v1105 = vsel %vm1102, %v1104, %v1100
    %v1106 = vmul.f32 1.0, %v1105
    %v1107 = vtanh.pop %v1087
    %v1108 = vmul.f32 %v1106, %v1039
    %1110 = vrot.lane.b32.xlu0 %v1107, 64
    %v1111 = vpop.permute.xlu0 %1110
    %v1113 = vmul.f32 %v1106, %v1111
    %1115 = vrot.lane.b32.xlu0 %v1113, 32
    %v1116 = vpop.permute.xlu0 %1115
    %v1118 = vadd.f32 %v1108, %v1116
    %v1119 = vtanh.pop %v1118
    %1121 = vrot.lane.b32.xlu0 %v1119, 64
    %v1122 = vpop.permute.xlu0 %1121
    %v1124 = vmul.f32 %v1106, %v1122
    %1126 = vrot.lane.b32.xlu0 %v1124, 32
    %v1127 = vpop.permute.xlu0 %1126
    %1129 = vst.msk [vmem:[#allocation6 + $0x3] sm:$0x1] %vm890, %v1127
    %1130 = vst.msk [vmem:[#allocation7 + $0x3] sm:$0x2] %vm892, %v1127
    %v1131 = vpack.c.bf16 %v1124, %v1124
    %1133 = vrot.lane.b32.xlu0 %v1131, 32
    %v1134 = vpop.permute.xlu0 %1133
    %v1136 = vsel %vm817, %v1134, 0
    %1138 = vmatpush.bf16.msra.mxu0 0
    %1139 = vmatpush.bf16.msra.mxu0 0
    %1140 = vmatpush.bf16.msra.mxu0 0
    %1141 = vmatpush.bf16.msra.mxu0 0
    %1142 = vmatpush.bf16.msra.mxu0 0
    %1143 = vmatpush.bf16.msra.mxu0 0
    %1144 = vmatpush.bf16.msra.mxu0 %v811
    %1145 = vmatpush.bf16.msra.mxu0 %v809
    %1146 = vmatmul.bf16.gmra.mxu0 %v1136
    %v1147 = vpop.f32.mrf.mxu0
    %v1148 = vadd.f32 0.0, %v1147
    %v1149 = vpop.f32.mrf.mxu0
    %1150 = vdwg.mxu0
    %1151 = vmatpush.bf16.msra.mxu0 0
    %1152 = vmatpush.bf16.msra.mxu0 0
    %1153 = vmatpush.bf16.msra.mxu0 0
    %1154 = vmatpush.bf16.msra.mxu0 0
    %1155 = vmatpush.bf16.msra.mxu0 0
    %1156 = vmatpush.bf16.msra.mxu0 0
    %1157 = vmatpush.bf16.msra.mxu0 %v812
    %1158 = vmatpush.bf16.msra.mxu0 %v810
    %1159 = vmatmul.bf16.gmra.mxu0 %v1136
    %v1160 = vpop.f32.mrf.mxu0
    %v1161 = vadd.f32 0.0, %v1160
    %v1162 = vpop.f32.mrf.mxu0
    %1163 = vdwg.mxu0
    %v1164 = vsel %vm796, %v1148, %v1161
    %v1165 = vld [vmem:[#allocation8 + $0x8] sm:$0x3]
    %v1166 = vadd.f32 %v1164, %v1165
    %v1167 = vxor.u32 %v1166, 2147483648
    %v1168 = vmul.f32 %v1167, 1.442695
    %v1169 = vpow.pop %v1168
    %v1170 = vadd.f32 %v1169, 1.0
    %v1171 = vrcp.pop %v1170
    %v1172 = vmul.f32 %v1170, %v1171
    %v1173 = vsub.f32 1.0, %v1172
    %v1174 = vmul.f32 %v1171, %v1173
    %v1175 = vadd.f32 %v1171, %v1174
    %vm1176 = vweird.f32 %v1170
    %vm1177 = vweird.f32 %v1171
    %vm1178 = vmor %vm1176, %vm1177
    %v1179 = vsel %vm1178, %v1171, %v1175
    %v1180 = vand.u32 2147483647, %v1170
    %vm1181 = vcmp.eq.f32.partialorder %v1180, 8.507059e+37
    %v1182 = vand.u32 %v1170, 2147483648
    %v1183 = vor.u32 1.1754944e-38, %v1182
    %v1184 = vsel %vm1181, %v1183, %v1179
    %v1185 = vmul.f32 1.0, %v1184
    %v1186 = vtanh.pop %v1166
    %v1187 = vmul.f32 %v1185, %v1118
    %1189 = vrot.lane.b32.xlu0 %v1186, 64
    %v1190 = vpop.permute.xlu0 %1189
    %v1192 = vmul.f32 %v1185, %v1190
    %1194 = vrot.lane.b32.xlu0 %v1192, 32
    %v1195 = vpop.permute.xlu0 %1194
    %v1197 = vadd.f32 %v1187, %v1195
    %v1198 = vtanh.pop %v1197
    %1200 = vrot.lane.b32.xlu0 %v1198, 64
    %v1201 = vpop.permute.xlu0 %1200
    %v1203 = vmul.f32 %v1185, %v1201
    %1205 = vrot.lane.b32.xlu0 %v1203, 32
    %v1206 = vpop.permute.xlu0 %1205
    %1208 = vst.msk [vmem:[#allocation6 + $0x4] sm:$0x1] %vm890, %v1206
    %1209 = vst.msk [vmem:[#allocation7 + $0x2] sm:$0x2] %vm892, %v1206
    %v1210 = vpack.c.bf16 %v1203, %v1203
    %1212 = vrot.lane.b32.xlu0 %v1210, 32
    %v1213 = vpop.permute.xlu0 %1212
    %v1215 = vsel %vm817, %v1213, 0
    %1217 = vmatpush.bf16.msra.mxu0 0
    %1218 = vmatpush.bf16.msra.mxu0 0
    %1219 = vmatpush.bf16.msra.mxu0 0
    %1220 = vmatpush.bf16.msra.mxu0 0
    %1221 = vmatpush.bf16.msra.mxu0 0
    %1222 = vmatpush.bf16.msra.mxu0 0
    %1223 = vmatpush.bf16.msra.mxu0 %v811
    %1224 = vmatpush.bf16.msra.mxu0 %v809
    %1225 = vmatmul.bf16.gmra.mxu0 %v1215
    %v1226 = vpop.f32.mrf.mxu0
    %v1227 = vadd.f32 0.0, %v1226
    %v1228 = vpop.f32.mrf.mxu0
    %1229 = vdwg.mxu0
    %1230 = vmatpush.bf16.msra.mxu0 0
    %1231 = vmatpush.bf16.msra.mxu0 0
    %1232 = vmatpush.bf16.msra.mxu0 0
    %1233 = vmatpush.bf16.msra.mxu0 0
    %1234 = vmatpush.bf16.msra.mxu0 0
    %1235 = vmatpush.bf16.msra.mxu0 0
    %1236 = vmatpush.bf16.msra.mxu0 %v812
    %1237 = vmatpush.bf16.msra.mxu0 %v810
    %1238 = vmatmul.bf16.gmra.mxu0 %v1215
    %v1239 = vpop.f32.mrf.mxu0
    %v1240 = vadd.f32 0.0, %v1239
    %v1241 = vpop.f32.mrf.mxu0
    %1242 = vdwg.mxu0
    %v1243 = vsel %vm796, %v1227, %v1240
    %v1244 = vld [vmem:[#allocation8 + $0xa] sm:$0x3]
    %v1245 = vadd.f32 %v1243, %v1244
    %v1246 = vxor.u32 %v1245, 2147483648
    %v1247 = vmul.f32 %v1246, 1.442695
    %v1248 = vpow.pop %v1247
    %v1249 = vadd.f32 %v1248, 1.0
    %v1250 = vrcp.pop %v1249
    %v1251 = vmul.f32 %v1249, %v1250
    %v1252 = vsub.f32 1.0, %v1251
    %v1253 = vmul.f32 %v1250, %v1252
    %v1254 = vadd.f32 %v1250, %v1253
    %vm1255 = vweird.f32 %v1249
    %vm1256 = vweird.f32 %v1250
    %vm1257 = vmor %vm1255, %vm1256
    %v1258 = vsel %vm1257, %v1250, %v1254
    %v1259 = vand.u32 2147483647, %v1249
    %vm1260 = vcmp.eq.f32.partialorder %v1259, 8.507059e+37
    %v1261 = vand.u32 %v1249, 2147483648
    %v1262 = vor.u32 1.1754944e-38, %v1261
    %v1263 = vsel %vm1260, %v1262, %v1258
    %v1264 = vmul.f32 1.0, %v1263
    %v1265 = vtanh.pop %v1245
    %v1266 = vmul.f32 %v1264, %v1197
    %1268 = vrot.lane.b32.xlu0 %v1265, 64
    %v1269 = vpop.permute.xlu0 %1268
    %v1271 = vmul.f32 %v1264, %v1269
    %1273 = vrot.lane.b32.xlu0 %v1271, 32
    %v1274 = vpop.permute.xlu0 %1273
    %v1276 = vadd.f32 %v1266, %v1274
    %v1277 = vtanh.pop %v1276
    %1279 = vrot.lane.b32.xlu0 %v1277, 64
    %v1280 = vpop.permute.xlu0 %1279
    %v1282 = vmul.f32 %v1264, %v1280
    %1284 = vrot.lane.b32.xlu0 %v1282, 32
    %v1285 = vpop.permute.xlu0 %1284
    %1287 = vst.msk [vmem:[#allocation6 + $0x5] sm:$0x1] %vm890, %v1285
    %1288 = vst.msk [vmem:[#allocation7 + $0x1] sm:$0x2] %vm892, %v1285
    %v1289 = vpack.c.bf16 %v1282, %v1282
    %1291 = vrot.lane.b32.xlu0 %v1289, 32
    %v1292 = vpop.permute.xlu0 %1291
    %v1294 = vsel %vm817, %v1292, 0
    %1296 = vmatpush.bf16.msra.mxu0 0
    %1297 = vmatpush.bf16.msra.mxu0 0
    %1298 = vmatpush.bf16.msra.mxu0 0
    %1299 = vmatpush.bf16.msra.mxu0 0
    %1300 = vmatpush.bf16.msra.mxu0 0
    %1301 = vmatpush.bf16.msra.mxu0 0
    %1302 = vmatpush.bf16.msra.mxu0 %v811
    %1303 = vmatpush.bf16.msra.mxu0 %v809
    %1304 = vmatmul.bf16.gmra.mxu0 %v1294
    %v1305 = vpop.f32.mrf.mxu0
    %v1306 = vadd.f32 0.0, %v1305
    %v1307 = vpop.f32.mrf.mxu0
    %1308 = vdwg.mxu0
    %1309 = vmatpush.bf16.msra.mxu0 0
    %1310 = vmatpush.bf16.msra.mxu0 0
    %1311 = vmatpush.bf16.msra.mxu0 0
    %1312 = vmatpush.bf16.msra.mxu0 0
    %1313 = vmatpush.bf16.msra.mxu0 0
    %1314 = vmatpush.bf16.msra.mxu0 0
    %1315 = vmatpush.bf16.msra.mxu0 %v812
    %1316 = vmatpush.bf16.msra.mxu0 %v810
    %1317 = vmatmul.bf16.gmra.mxu0 %v1294
    %v1318 = vpop.f32.mrf.mxu0
    %v1319 = vadd.f32 0.0, %v1318
    %v1320 = vpop.f32.mrf.mxu0
    %1321 = vdwg.mxu0
    %v1322 = vsel %vm796, %v1306, %v1319
    %v1323 = vld [vmem:[#allocation8 + $0xc] sm:$0x3]
    %v1324 = vadd.f32 %v1322, %v1323
    %v1325 = vxor.u32 %v1324, 2147483648
    %v1326 = vmul.f32 %v1325, 1.442695
    %v1327 = vpow.pop %v1326
    %v1328 = vadd.f32 %v1327, 1.0
    %v1329 = vrcp.pop %v1328
    %v1330 = vmul.f32 %v1328, %v1329
    %v1331 = vsub.f32 1.0, %v1330
    %v1332 = vmul.f32 %v1329, %v1331
    %v1333 = vadd.f32 %v1329, %v1332
    %vm1334 = vweird.f32 %v1328
    %vm1335 = vweird.f32 %v1329
    %vm1336 = vmor %vm1334, %vm1335
    %v1337 = vsel %vm1336, %v1329, %v1333
    %v1338 = vand.u32 2147483647, %v1328
    %vm1339 = vcmp.eq.f32.partialorder %v1338, 8.507059e+37
    %v1340 = vand.u32 %v1328, 2147483648
    %v1341 = vor.u32 1.1754944e-38, %v1340
    %v1342 = vsel %vm1339, %v1341, %v1337
    %v1343 = vmul.f32 1.0, %v1342
    %v1344 = vtanh.pop %v1324
    %v1345 = vmul.f32 %v1343, %v1276
    %1347 = vrot.lane.b32.xlu0 %v1344, 64
    %v1348 = vpop.permute.xlu0 %1347
    %v1350 = vmul.f32 %v1343, %v1348
    %1352 = vrot.lane.b32.xlu0 %v1350, 32
    %v1353 = vpop.permute.xlu0 %1352
    %v1355 = vadd.f32 %v1345, %v1353
    %v1356 = vtanh.pop %v1355
    %1358 = vrot.lane.b32.xlu0 %v1356, 64
    %v1359 = vpop.permute.xlu0 %1358
    %v1361 = vmul.f32 %v1343, %v1359
    %1363 = vrot.lane.b32.xlu0 %v1361, 32
    %v1364 = vpop.permute.xlu0 %1363
    %1366 = vst.msk [vmem:[#allocation6 + $0x6] sm:$0x1] %vm890, %v1364
    %1367 = vst.msk [vmem:[#allocation7] sm:$0x2] %vm892, %v1364
    %v1368 = vpack.c.bf16 %v1361, %v1361
    %1370 = vrot.lane.b32.xlu0 %v1368, 32
    %v1371 = vpop.permute.xlu0 %1370
    %v1373 = vsel %vm817, %v1371, 0
    %1375 = vmatpush.bf16.msra.mxu0 0
    %1376 = vmatpush.bf16.msra.mxu0 0
    %1377 = vmatpush.bf16.msra.mxu0 0
    %1378 = vmatpush.bf16.msra.mxu0 0
    %1379 = vmatpush.bf16.msra.mxu0 0
    %1380 = vmatpush.bf16.msra.mxu0 0
    %1381 = vmatpush.bf16.msra.mxu0 %v811
    %1382 = vmatpush.bf16.msra.mxu0 %v809
    %1383 = vmatmul.bf16.gmra.mxu0 %v1373
    %v1384 = vpop.f32.mrf.mxu0
    %v1385 = vadd.f32 0.0, %v1384
    %v1386 = vpop.f32.mrf.mxu0
    %1387 = vdwg.mxu0
    %1388 = vmatpush.bf16.msra.mxu0 0
    %1389 = vmatpush.bf16.msra.mxu0 0
    %1390 = vmatpush.bf16.msra.mxu0 0
    %1391 = vmatpush.bf16.msra.mxu0 0
    %1392 = vmatpush.bf16.msra.mxu0 0
    %1393 = vmatpush.bf16.msra.mxu0 0
    %1394 = vmatpush.bf16.msra.mxu0 %v812
    %1395 = vmatpush.bf16.msra.mxu0 %v810
    %1396 = vmatmul.bf16.gmra.mxu0 %v1373
    %v1397 = vpop.f32.mrf.mxu0
    %v1398 = vadd.f32 0.0, %v1397
    %v1399 = vpop.f32.mrf.mxu0
    %1400 = vdwg.mxu0
    %v1401 = vsel %vm796, %v1385, %v1398
    %v1402 = vld [vmem:[#allocation8 + $0xe] sm:$0x3]
    %v1403 = vadd.f32 %v1401, %v1402
    %v1404 = vxor.u32 %v1403, 2147483648
    %v1405 = vmul.f32 %v1404, 1.442695
    %v1406 = vpow.pop %v1405
    %v1407 = vadd.f32 %v1406, 1.0
    %v1408 = vrcp.pop %v1407
    %v1409 = vmul.f32 %v1407, %v1408
    %v1410 = vsub.f32 1.0, %v1409
    %v1411 = vmul.f32 %v1408, %v1410
    %v1412 = vadd.f32 %v1408, %v1411
    %vm1413 = vweird.f32 %v1407
    %vm1414 = vweird.f32 %v1408
    %vm1415 = vmor %vm1413, %vm1414
    %v1416 = vsel %vm1415, %v1408, %v1412
    %v1417 = vand.u32 2147483647, %v1407
    %vm1418 = vcmp.eq.f32.partialorder %v1417, 8.507059e+37
    %v1419 = vand.u32 %v1407, 2147483648
    %v1420 = vor.u32 1.1754944e-38, %v1419
    %v1421 = vsel %vm1418, %v1420, %v1416
    %v1422 = vmul.f32 1.0, %v1421
    %v1423 = vtanh.pop %v1403
    %v1424 = vmul.f32 %v1422, %v1355
    %1426 = vrot.lane.b32.xlu0 %v1423, 64
    %v1427 = vpop.permute.xlu0 %1426
    %v1429 = vmul.f32 %v1422, %v1427
    %1431 = vrot.lane.b32.xlu0 %v1429, 32
    %v1432 = vpop.permute.xlu0 %1431
    %v1434 = vadd.f32 %v1424, %v1432
    %v1435 = vtanh.pop %v1434
    %1437 = vrot.lane.b32.xlu0 %v1435, 64
    %v1438 = vpop.permute.xlu0 %1437
    %v1440 = vmul.f32 %v1422, %v1438
    %1442 = vrot.lane.b32.xlu0 %v1440, 32
    %v1443 = vpop.permute.xlu0 %1442
    %1445 = vst.msk [vmem:[#allocation6 + $0x7] sm:$0x1] %vm890, %v1443
    %1446 = vst.msk [vmem:[#allocation7 - $0x1] sm:$0x2] %vm892, %v1443
    %v1447 = vld [vmem:[#allocation6] sm:$0xff]
    %v1448 = vpack.c.bf16 %v1447, %v1447
    %v1449 = vld [vmem:[%s6] sm:$0xf]
    %v1450 = vld [vmem:[%s6 + $0x4] sm:$0xf]
    %v1451 = vld [vmem:[%s6 + $0x8] sm:$0xf]
    %v1452 = vld [vmem:[%s6 + $0xc] sm:$0xf]
    %v1453 = vld [vmem:[#allocation7] sm:$0xff]
    %v1454 = vpack.c.bf16 %v1453, %v1453
    %v1455 = vld [vmem:[%s6 + $0x10] sm:$0xf]
    %v1456 = vld [vmem:[%s6 + $0x14] sm:$0xf]
    %v1457 = vld [vmem:[%s6 + $0x18] sm:$0xf]
    %v1458 = vld [vmem:[%s6 + $0x1c] sm:$0xf]
    %v1463 = vunpack.c.l.b16 %v1455
    %v1464 = vunpack.c.l.b16 %v1456
    %v1465 = vunpack.c.l.b16 %v1457
    %v1466 = vunpack.c.l.b16 %v1458
    %v1467 = vpack.c.b16 %v1464, %v1463
    %v1468 = vpack.c.b16 %v1466, %v1465
    %v1472 = vsel %vm817, %v1454, 0
    %1474 = vmatpush.bf16.msra.mxu0 0
    %1475 = vmatpush.bf16.msra.mxu0 0
    %1476 = vmatpush.bf16.msra.mxu0 0
    %1477 = vmatpush.bf16.msra.mxu0 0
    %1478 = vmatpush.bf16.msra.mxu0 0
    %1479 = vmatpush.bf16.msra.mxu0 0
    %1480 = vmatpush.bf16.msra.mxu0 %v1468
    %1481 = vmatpush.bf16.msra.mxu0 %v1467
    %1482 = vmatmul.bf16.gmra.mxu0 %v1472
    %v1483 = vpop.f32.mrf.mxu0
    %v1484 = vadd.f32 0.0, %v1483
    %v1485 = vpop.f32.mrf.mxu0
    %1486 = vdwg.mxu0
    %v1491 = vunpack.c.l.b16 %v1449
    %v1492 = vunpack.c.l.b16 %v1450
    %v1493 = vunpack.c.l.b16 %v1451
    %v1494 = vunpack.c.l.b16 %v1452
    %v1495 = vpack.c.b16 %v1492, %v1491
    %v1496 = vpack.c.b16 %v1494, %v1493
    %v1500 = vsel %vm817, %v1448, 0
    %1502 = vmatpush.bf16.msra.mxu0 0
    %1503 = vmatpush.bf16.msra.mxu0 0
    %1504 = vmatpush.bf16.msra.mxu0 0
    %1505 = vmatpush.bf16.msra.mxu0 0
    %1506 = vmatpush.bf16.msra.mxu0 0
    %1507 = vmatpush.bf16.msra.mxu0 0
    %1508 = vmatpush.bf16.msra.mxu0 %v1496
    %1509 = vmatpush.bf16.msra.mxu0 %v1495
    %1510 = vmatmul.bf16.gmra.mxu0 %v1500
    %v1511 = vpop.f32.mrf.mxu0
    %v1512 = vadd.f32 %v1484, %v1511
    %v1513 = vpop.f32.mrf.mxu0
    %1514 = vdwg.mxu0
    %v1515 = vld [vmem:[%s6 + $0x20] sm:$0x1]
    %v1516 = vunpack.c.l.bf16 %v1515
    %v1517 = vperm.slane %v1516, 0
    %v1518 = vadd.f32 %v1512, %v1517
    %1519 = vmax.xlane.f32.xlu0 %v1518
    %v1520 = vpop.xlane.xlu0 %1519
    %v1521 = vsub.f32 %v1518, %v1520
    %v1522 = vmul.f32 %v1521, 1.442695
    %v1523 = vpow.pop %v1522
    %1524 = vadd.xlane.f32.xlu0 %v1523
    %v1525 = vpop.xlane.xlu0 %1524
    %v1526 = vlog2.pop %v1525
    %v1527 = vmul.f32 %v1526, 0.6931472
    %v1528 = vsub.f32 %v1521, %v1527
    %1529 = vst [vmem:[#allocation16] sm:$0xff] %v1528
    // Predicated region
    $region42: #{customed_bilstm_forward.1} parent=1 // pred_check
      _
    $region43: #{customed_bilstm_forward.1} parent=1 // pred_check_branch
      %1531 = sbr.rel (0) target = $region45
    $region44: #{customed_bilstm_forward.1} parent=1 // pred_region
      %1533 = vsyncadd [#allocation11], 0
      %s1535 = sshll.u32 [#allocation16], 4
      %s1536 = int_to_ptr.vmem [resolvable:$true] %s1535
      %s1537 = sshll.u32 %s7, 4
      %s1538 = int_to_ptr.hbm [resolvable:$true] %s1537
      %1540 = dma.vmem_to_hbm [thread:$0]  %s1536, 128, %s1538, [#allocation11]
    $region45: #{customed_bilstm_forward.1} parent=1 // pred_fallthru
      _
    // Predicated region
    $region46: #{customed_bilstm_forward.1} parent=1 // pred_check
      _
    $region47: #{customed_bilstm_forward.1} parent=1 // pred_check_branch
      %1542 = sbr.rel (0) target = $region49
    $region48: #{customed_bilstm_forward.1} parent=1 // pred_region
      %1544 = dma.done [#allocation11], 128
    $region49: #{customed_bilstm_forward.1} parent=1 // pred_fallthru
      _
    %1545 = vsyncpa [#allocation10], 1
    %1546 = vsyncpa [#allocation11], 1
    %1547 = vsyncpa [#allocation12], 1
    %1548 = vsyncpa [#allocation14], 1

</llo_original>
